<compile_context>
chip_gen: v7x
topology: tpu7x:2x2x1
jax: 0.10.0
libtpu: 0.0.40
codegen_flags: <defaults>
</compile_context>

<pallas_src>
import functools

import jax
import jax.numpy as jnp
import numpy as np
from jax import lax
from jax.experimental import pallas as pl
from jax.experimental.pallas import tpu as pltpu


def _round_up(x, m):
    return (x + m - 1) // m * m


_TILE_M = 512  # rows of A per grid step (256-1024 all fine; 512 fits every chip)


# ----------------------------------------------------------------------------
# Pallas kernel: fused matmul + bias + optional ReLU (bf16 in, f32 accumulate)
# ----------------------------------------------------------------------------
def _matmul_bias_act_kernel(a_ref, w_ref, b_ref, o_ref, *, apply_relu):
    acc = jnp.dot(a_ref[...], w_ref[...], preferred_element_type=jnp.float32)
    acc = acc + b_ref[...]              # (1, N) f32 broadcasts over rows
    if apply_relu:
        acc = jnp.maximum(acc, 0.0)
    o_ref[...] = acc


def matmul_bias_act(a, w, b, apply_relu):
    """relu(a @ w + b) (or no relu), tiled over M with a Pallas grid.

    a: (M, K) bf16/f32, w: (K, N) bf16, b: (1, N) f32.  K and N stay unpadded
    (full-extent blocks); only M is padded to a sublane-friendly multiple.
    """
    m, k = a.shape
    k2, n = w.shape
    assert k == k2 and b.shape == (1, n)
    a = a.astype(jnp.bfloat16)
    w = w.astype(jnp.bfloat16)
    b = b.astype(jnp.float32)

    tm = _round_up(m, 16) if m <= _TILE_M else _TILE_M
    mp = _round_up(m, tm)
    if mp != m:
        a = jnp.pad(a, ((0, mp - m), (0, 0)))

    out = pl.pallas_call(
        functools.partial(_matmul_bias_act_kernel, apply_relu=apply_relu),
        out_shape=jax.ShapeDtypeStruct((mp, n), jnp.float32),
        grid=(mp // tm,),
        in_specs=[
            pl.BlockSpec((tm, k), lambda i: (i, 0)),   # A: tiled over M, K full-extent
            pl.BlockSpec((k, n), lambda i: (0, 0)),    # W: resident, same block each step
            pl.BlockSpec((1, n), lambda i: (0, 0)),    # bias
        ],
        out_specs=pl.BlockSpec((tm, n), lambda i: (i, 0)),
        compiler_params=pltpu.CompilerParams(
            dimension_semantics=("parallel",),         # shard M tiles across TCs (v7x)
            vmem_limit_bytes=48 << 20,
        ),
    )(a, w, b)
    return out[:m] if mp != m else out


# ----------------------------------------------------------------------------
# Conv2d(k=5, stride=2, pad=2) + ReLU via NHWC im2col + Pallas matmul
# ----------------------------------------------------------------------------
def conv2d_relu_nhwc(x, wmat, bias, *, stride=2, pad=2, kh=5, kw=5, apply_relu=True):
    # x: (N, H, W, C); wmat: (KH*KW*C, OC) packed in (kh, kw, c) order; bias: (1, OC)
    n, h, w, c = x.shape
    oc = wmat.shape[1]
    oh = (h + 2 * pad - kh) // stride + 1
    ow = (w + 2 * pad - kw) // stride + 1
    xp = jnp.pad(x.astype(jnp.bfloat16), ((0, 0), (pad, pad), (pad, pad), (0, 0)))
    patches = [
        xp[:, i:i + (oh - 1) * stride + 1:stride,
              j:j + (ow - 1) * stride + 1:stride, :]
        for i in range(kh) for j in range(kw)
    ]
    cols = jnp.stack(patches, axis=3).reshape(n * oh * ow, kh * kw * c)  # lane-dense, no 6-D transpose
    out = matmul_bias_act(cols, wmat, bias, apply_relu)                  # (n*oh*ow, oc) f32
    return out.reshape(n, oh, ow, oc)                                    # already NHWC


# ----------------------------------------------------------------------------
# Parameters (PyTorch layout) + one-time packing + forward
# ----------------------------------------------------------------------------
def init_params(key, ndf):
    ks = jax.random.split(key, 8)

    def conv_p(kw_, kb_, oc, ic):
        bound = 1.0 / np.sqrt(ic * 5 * 5)
        w = jax.random.uniform(kw_, (oc, ic, 5, 5), jnp.float32, -bound, bound)
        b = jax.random.uniform(kb_, (oc,), jnp.float32, -bound, bound)
        return w, b

    w1, b1 = conv_p(ks[0], ks[1], ndf, 1)
    w2, b2 = conv_p(ks[2], ks[3], 2 * ndf, ndf)
    w3, b3 = conv_p(ks[4], ks[5], 4 * ndf, 2 * ndf)
    fc_in = 4 * 4 * 4 * ndf
    bound = 1.0 / np.sqrt(fc_in)
    w_fc = jax.random.uniform(ks[6], (1, fc_in), jnp.float32, -bound, bound)
    b_fc = jax.random.uniform(ks[7], (1,), jnp.float32, -bound, bound)
    return dict(w1=w1, b1=b1, w2=w2, b2=b2, w3=w3, b3=b3, w_fc=w_fc, b_fc=b_fc)


def pack_params(params, ndf):
    """One-time: reorder/transpose/cast weights to the kernel layout (bf16)."""
    def pack_conv(w, b):
        oc, ic, kh, kw = w.shape
        # (OC, IC, KH, KW) -> (KH, KW, IC, OC) -> (KH*KW*IC, OC): matches (kh,kw,c) im2col cols.
        wmat = jnp.transpose(w, (2, 3, 1, 0)).reshape(kh * kw * ic, oc)
        return wmat.astype(jnp.bfloat16), b.reshape(1, oc).astype(jnp.float32)

    w1, b1 = pack_conv(params["w1"], params["b1"])
    w2, b2 = pack_conv(params["w2"], params["b2"])
    w3, b3 = pack_conv(params["w3"], params["b3"])

    # Final Linear: PyTorch flattens NCHW as (c, h, w); our features flatten NHWC
    # as (h, w, c) -> permute the weight columns once here.  Pad the single
    # output unit to 8 lanes (extra cols/bias are zero, sliced off after kernel).
    c, hh, ww = 4 * ndf, 4, 4
    w_fc = params["w_fc"].reshape(1, c, hh, ww).transpose(0, 2, 3, 1).reshape(-1)
    w_fc_mat = jnp.zeros((c * hh * ww, 8), jnp.float32).at[:, 0].set(w_fc)
    b_fc = jnp.zeros((1, 8), jnp.float32).at[0, 0].set(params["b_fc"][0])
    return dict(w1=w1, b1=b1, w2=w2, b2=b2, w3=w3, b3=b3,
                w_fc=w_fc_mat.astype(jnp.bfloat16), b_fc=b_fc)


def discriminator_forward(packed, x):
    x = x.reshape(-1, 1, 28, 28)
    x = jnp.transpose(x, (0, 2, 3, 1))                       # NHWC, once, on the tiny input
    h = conv2d_relu_nhwc(x, packed["w1"], packed["b1"])      # (N, 14, 14, ndf)
    h = conv2d_relu_nhwc(h, packed["w2"], packed["b2"])      # (N, 7, 7, 2ndf)
    h = conv2d_relu_nhwc(h, packed["w3"], packed["b3"])      # (N, 4, 4, 4ndf)
    feat = h.reshape(h.shape[0], -1).astype(jnp.bfloat16)    # (h,w,c) flatten; matches packed w_fc
    out = matmul_bias_act(feat, packed["w_fc"], packed["b_fc"], apply_relu=False)
    return out[:, 0]                                         # (N,)


# Pure-JAX f32 reference (lax.conv) on the original PyTorch-layout params.
def reference_forward(params, x, ndf):
    x = x.reshape(-1, 1, 28, 28)

    def conv(x, w, b):
        y = lax.conv_general_dilated(
            x, w, window_strides=(2, 2), padding=((2, 2), (2, 2)),
            dimension_numbers=("NCHW", "OIHW", "NCHW"))
        return jax.nn.relu(y + b[None, :, None, None])

    h = conv(x, params["w1"], params["b1"])
    h = conv(h, params["w2"], params["b2"])
    h = conv(h, params["w3"], params["b3"])
    feat = h.reshape(-1, 4 * 4 * 4 * ndf)
    return (feat @ params["w_fc"].T + params["b_fc"]).reshape(-1)


if __name__ == "__main__":
    ndf = 8
    key = jax.random.PRNGKey(0)
    k_param, k_x = jax.random.split(key)
    params = init_params(k_param, ndf)
    packed = pack_params(params, ndf)
    x = jax.random.normal(k_x, (2, 1, 28, 28), jnp.float32)

    fwd = jax.jit(discriminator_forward)
    out = jax.block_until_ready(fwd(packed, x))

    ref = jax.block_until_ready(reference_forward(params, x, ndf))
    assert out.shape == (2,), out.shape
    # bf16 operands / f32 accumulation -> compare at bf16-appropriate tolerance.
    assert jnp.allclose(out, ref, rtol=5e-2, atol=5e-2), (out, ref)
    print("KERNEL_OK")
</pallas_src>

<mosaic_0001>
module attributes {stable_mosaic.version = 11 : i64} {
  func.func @_matmul_bias_act_kernel(%arg0: i32, %arg1: memref<400x25xbf16, #tpu.memory_space<vmem>>, %arg2: memref<25x8xbf16, #tpu.memory_space<vmem>>, %arg3: memref<1x8xf32, #tpu.memory_space<vmem>>, %arg4: memref<400x8xf32, #tpu.memory_space<vmem>>) attributes {dimension_semantics = [#tpu.dimension_semantics<parallel>], iteration_bounds = array<i64: 1>, scalar_prefetch = 0 : i64, scratch_operands = 0 : i64, tpu.core_type = #tpu.core_type<tc>, window_params = [{transform_indices = @transform_0, window_bounds = array<i64: 400, 25>}, {pipeline_mode = #tpu.pipeline_mode<synchronous>, transform_indices = @transform_1, window_bounds = array<i64: 25, 8>}, {pipeline_mode = #tpu.pipeline_mode<synchronous>, transform_indices = @transform_2, window_bounds = array<i64: 1, 8>}, {transform_indices = @transform_3, window_bounds = array<i64: 400, 8>}]} {
    %c0 = arith.constant 0 : index
    %c0_0 = arith.constant 0 : index
    %0 = vector.load %arg1[%c0, %c0_0] : memref<400x25xbf16, #tpu.memory_space<vmem>>, vector<400x25xbf16>
    %c0_1 = arith.constant 0 : index
    %c0_2 = arith.constant 0 : index
    %1 = vector.load %arg2[%c0_1, %c0_2] : memref<25x8xbf16, #tpu.memory_space<vmem>>, vector<25x8xbf16>
    %cst = arith.constant dense<0.000000e+00> : vector<400x8xf32>
    %2 = tpu.matmul %0, %1, %cst {dimension_numbers = #tpu.dot_dimension_numbers<[1], [0], [0], [1], [0, 0, 1, 1], [], []>} : vector<400x25xbf16>, vector<25x8xbf16>, vector<400x8xf32> -> vector<400x8xf32>
    %c0_3 = arith.constant 0 : index
    %c0_4 = arith.constant 0 : index
    %3 = vector.load %arg3[%c0_3, %c0_4] : memref<1x8xf32, #tpu.memory_space<vmem>>, vector<1x8xf32>
    %4 = vector.broadcast %3 : vector<1x8xf32> to vector<400x8xf32>
    %5 = arith.addf %2, %4 : vector<400x8xf32>
    %cst_5 = arith.constant 0.000000e+00 : f32
    %6 = vector.broadcast %cst_5 : f32 to vector<400x8xf32>
    %7 = arith.maximumf %5, %6 : vector<400x8xf32>
    %c0_6 = arith.constant 0 : index
    %c0_7 = arith.constant 0 : index
    %8 = vector.load %arg4[%c0_6, %c0_7] : memref<400x8xf32, #tpu.memory_space<vmem>>, vector<400x8xf32>
    tpu.vector_store %arg4[%c0_6, %c0_7], %7 {strides = array<i32>} : memref<400x8xf32, #tpu.memory_space<vmem>>, vector<400x8xf32>,
    return
  }
  func.func @transform_0(%arg0: i32) -> (i32, i32) {
    %c0_i32 = arith.constant 0 : i32
    %c0_i32_0 = arith.constant 0 : i32
    return %arg0, %c0_i32 : i32, i32
  }
  func.func @transform_1(%arg0: i32) -> (i32, i32) {
    %c0_i32 = arith.constant 0 : i32
    %c0_i32_0 = arith.constant 0 : i32
    %c0_i32_1 = arith.constant 0 : i32
    return %c0_i32, %c0_i32_0 : i32, i32
  }
  func.func @transform_2(%arg0: i32) -> (i32, i32) {
    %c0_i32 = arith.constant 0 : i32
    %c0_i32_0 = arith.constant 0 : i32
    %c0_i32_1 = arith.constant 0 : i32
    return %c0_i32, %c0_i32_0 : i32, i32
  }
  func.func @transform_3(%arg0: i32) -> (i32, i32) {
    %c0_i32 = arith.constant 0 : i32
    %c0_i32_0 = arith.constant 0 : i32
    return %arg0, %c0_i32 : i32, i32
  }
}

module attributes {stable_mosaic.version = 11 : i64} {
  func.func @_matmul_bias_act_kernel(%arg0: i32, %arg1: memref<112x200xbf16, #tpu.memory_space<vmem>>, %arg2: memref<200x16xbf16, #tpu.memory_space<vmem>>, %arg3: memref<1x16xf32, #tpu.memory_space<vmem>>, %arg4: memref<112x16xf32, #tpu.memory_space<vmem>>) attributes {dimension_semantics = [#tpu.dimension_semantics<parallel>], iteration_bounds = array<i64: 1>, scalar_prefetch = 0 : i64, scratch_operands = 0 : i64, tpu.core_type = #tpu.core_type<tc>, window_params = [{transform_indices = @transform_0, window_bounds = array<i64: 112, 200>}, {pipeline_mode = #tpu.pipeline_mode<synchronous>, transform_indices = @transform_1, window_bounds = array<i64: 200, 16>}, {pipeline_mode = #tpu.pipeline_mode<synchronous>, transform_indices = @transform_2, window_bounds = array<i64: 1, 16>}, {transform_indices = @transform_3, window_bounds = array<i64: 112, 16>}]} {
    %c0 = arith.constant 0 : index
    %c0_0 = arith.constant 0 : index
    %0 = vector.load %arg1[%c0, %c0_0] : memref<112x200xbf16, #tpu.memory_space<vmem>>, vector<112x200xbf16>
    %c0_1 = arith.constant 0 : index
    %c0_2 = arith.constant 0 : index
    %1 = vector.load %arg2[%c0_1, %c0_2] : memref<200x16xbf16, #tpu.memory_space<vmem>>, vector<200x16xbf16>
    %cst = arith.constant dense<0.000000e+00> : vector<112x16xf32>
    %2 = tpu.matmul %0, %1, %cst {dimension_numbers = #tpu.dot_dimension_numbers<[1], [0], [0], [1], [0, 0, 1, 1], [], []>} : vector<112x200xbf16>, vector<200x16xbf16>, vector<112x16xf32> -> vector<112x16xf32>
    %c0_3 = arith.constant 0 : index
    %c0_4 = arith.constant 0 : index
    %3 = vector.load %arg3[%c0_3, %c0_4] : memref<1x16xf32, #tpu.memory_space<vmem>>, vector<1x16xf32>
    %4 = vector.broadcast %3 : vector<1x16xf32> to vector<112x16xf32>
    %5 = arith.addf %2, %4 : vector<112x16xf32>
    %cst_5 = arith.constant 0.000000e+00 : f32
    %6 = vector.broadcast %cst_5 : f32 to vector<112x16xf32>
    %7 = arith.maximumf %5, %6 : vector<112x16xf32>
    %c0_6 = arith.constant 0 : index
    %c0_7 = arith.constant 0 : index
    %8 = vector.load %arg4[%c0_6, %c0_7] : memref<112x16xf32, #tpu.memory_space<vmem>>, vector<112x16xf32>
    tpu.vector_store %arg4[%c0_6, %c0_7], %7 {strides = array<i32>} : memref<112x16xf32, #tpu.memory_space<vmem>>, vector<112x16xf32>,
    return
  }
  func.func @transform_0(%arg0: i32) -> (i32, i32) {
    %c0_i32 = arith.constant 0 : i32
    %c0_i32_0 = arith.constant 0 : i32
    return %arg0, %c0_i32 : i32, i32
  }
  func.func @transform_1(%arg0: i32) -> (i32, i32) {
    %c0_i32 = arith.constant 0 : i32
    %c0_i32_0 = arith.constant 0 : i32
    %c0_i32_1 = arith.constant 0 : i32
    return %c0_i32, %c0_i32_0 : i32, i32
  }
  func.func @transform_2(%arg0: i32) -> (i32, i32) {
    %c0_i32 = arith.constant 0 : i32
    %c0_i32_0 = arith.constant 0 : i32
    %c0_i32_1 = arith.constant 0 : i32
    return %c0_i32, %c0_i32_0 : i32, i32
  }
  func.func @transform_3(%arg0: i32) -> (i32, i32) {
    %c0_i32 = arith.constant 0 : i32
    %c0_i32_0 = arith.constant 0 : i32
    return %arg0, %c0_i32 : i32, i32
  }
}

module attributes {stable_mosaic.version = 11 : i64} {
  func.func @_matmul_bias_act_kernel(%arg0: i32, %arg1: memref<32x400xbf16, #tpu.memory_space<vmem>>, %arg2: memref<400x32xbf16, #tpu.memory_space<vmem>>, %arg3: memref<1x32xf32, #tpu.memory_space<vmem>>, %arg4: memref<32x32xf32, #tpu.memory_space<vmem>>) attributes {dimension_semantics = [#tpu.dimension_semantics<parallel>], iteration_bounds = array<i64: 1>, scalar_prefetch = 0 : i64, scratch_operands = 0 : i64, tpu.core_type = #tpu.core_type<tc>, window_params = [{transform_indices = @transform_0, window_bounds = array<i64: 32, 400>}, {pipeline_mode = #tpu.pipeline_mode<synchronous>, transform_indices = @transform_1, window_bounds = array<i64: 400, 32>}, {pipeline_mode = #tpu.pipeline_mode<synchronous>, transform_indices = @transform_2, window_bounds = array<i64: 1, 32>}, {transform_indices = @transform_3, window_bounds = array<i64: 32, 32>}]} {
    %c0 = arith.constant 0 : index
    %c0_0 = arith.constant 0 : index
    %0 = vector.load %arg1[%c0, %c0_0] : memref<32x400xbf16, #tpu.memory_space<vmem>>, vector<32x400xbf16>
    %c0_1 = arith.constant 0 : index
    %c0_2 = arith.constant 0 : index
    %1 = vector.load %arg2[%c0_1, %c0_2] : memref<400x32xbf16, #tpu.memory_space<vmem>>, vector<400x32xbf16>
    %cst = arith.constant dense<0.000000e+00> : vector<32x32xf32>
    %2 = tpu.matmul %0, %1, %cst {dimension_numbers = #tpu.dot_dimension_numbers<[1], [0], [0], [1], [0, 0, 1, 1], [], []>} : vector<32x400xbf16>, vector<400x32xbf16>, vector<32x32xf32> -> vector<32x32xf32>
    %c0_3 = arith.constant 0 : index
    %c0_4 = arith.constant 0 : index
    %3 = vector.load %arg3[%c0_3, %c0_4] : memref<1x32xf32, #tpu.memory_space<vmem>>, vector<1x32xf32>
    %4 = vector.broadcast %3 : vector<1x32xf32> to vector<32x32xf32>
    %5 = arith.addf %2, %4 : vector<32x32xf32>
    %cst_5 = arith.constant 0.000000e+00 : f32
    %6 = vector.broadcast %cst_5 : f32 to vector<32x32xf32>
    %7 = arith.maximumf %5, %6 : vector<32x32xf32>
    %c0_6 = arith.constant 0 : index
    %c0_7 = arith.constant 0 : index
    %8 = vector.load %arg4[%c0_6, %c0_7] : memref<32x32xf32, #tpu.memory_space<vmem>>, vector<32x32xf32>
    tpu.vector_store %arg4[%c0_6, %c0_7], %7 {strides = array<i32>} : memref<32x32xf32, #tpu.memory_space<vmem>>, vector<32x32xf32>,
    return
  }
  func.func @transform_0(%arg0: i32) -> (i32, i32) {
    %c0_i32 = arith.constant 0 : i32
    %c0_i32_0 = arith.constant 0 : i32
    return %arg0, %c0_i32 : i32, i32
  }
  func.func @transform_1(%arg0: i32) -> (i32, i32) {
    %c0_i32 = arith.constant 0 : i32
    %c0_i32_0 = arith.constant 0 : i32
    %c0_i32_1 = arith.constant 0 : i32
    return %c0_i32, %c0_i32_0 : i32, i32
  }
  func.func @transform_2(%arg0: i32) -> (i32, i32) {
    %c0_i32 = arith.constant 0 : i32
    %c0_i32_0 = arith.constant 0 : i32
    %c0_i32_1 = arith.constant 0 : i32
    return %c0_i32, %c0_i32_0 : i32, i32
  }
  func.func @transform_3(%arg0: i32) -> (i32, i32) {
    %c0_i32 = arith.constant 0 : i32
    %c0_i32_0 = arith.constant 0 : i32
    return %arg0, %c0_i32 : i32, i32
  }
}

module attributes {stable_mosaic.version = 11 : i64} {
  func.func @_matmul_bias_act_kernel(%arg0: i32, %arg1: memref<16x512xbf16, #tpu.memory_space<vmem>>, %arg2: memref<512x8xbf16, #tpu.memory_space<vmem>>, %arg3: memref<1x8xf32, #tpu.memory_space<vmem>>, %arg4: memref<16x8xf32, #tpu.memory_space<vmem>>) attributes {dimension_semantics = [#tpu.dimension_semantics<parallel>], iteration_bounds = array<i64: 1>, scalar_prefetch = 0 : i64, scratch_operands = 0 : i64, tpu.core_type = #tpu.core_type<tc>, window_params = [{transform_indices = @transform_0, window_bounds = array<i64: 16, 512>}, {pipeline_mode = #tpu.pipeline_mode<synchronous>, transform_indices = @transform_1, window_bounds = array<i64: 512, 8>}, {pipeline_mode = #tpu.pipeline_mode<synchronous>, transform_indices = @transform_2, window_bounds = array<i64: 1, 8>}, {transform_indices = @transform_3, window_bounds = array<i64: 16, 8>}]} {
    %c0 = arith.constant 0 : index
    %c0_0 = arith.constant 0 : index
    %0 = vector.load %arg1[%c0, %c0_0] : memref<16x512xbf16, #tpu.memory_space<vmem>>, vector<16x512xbf16>
    %c0_1 = arith.constant 0 : index
    %c0_2 = arith.constant 0 : index
    %1 = vector.load %arg2[%c0_1, %c0_2] : memref<512x8xbf16, #tpu.memory_space<vmem>>, vector<512x8xbf16>
    %cst = arith.constant dense<0.000000e+00> : vector<16x8xf32>
    %2 = tpu.matmul %0, %1, %cst {dimension_numbers = #tpu.dot_dimension_numbers<[1], [0], [0], [1], [0, 0, 1, 1], [], []>} : vector<16x512xbf16>, vector<512x8xbf16>, vector<16x8xf32> -> vector<16x8xf32>
    %c0_3 = arith.constant 0 : index
    %c0_4 = arith.constant 0 : index
    %3 = vector.load %arg3[%c0_3, %c0_4] : memref<1x8xf32, #tpu.memory_space<vmem>>, vector<1x8xf32>
    %4 = vector.broadcast %3 : vector<1x8xf32> to vector<16x8xf32>
    %5 = arith.addf %2, %4 : vector<16x8xf32>
    %c0_5 = arith.constant 0 : index
    %c0_6 = arith.constant 0 : index
    %6 = vector.load %arg4[%c0_5, %c0_6] : memref<16x8xf32, #tpu.memory_space<vmem>>, vector<16x8xf32>
    tpu.vector_store %arg4[%c0_5, %c0_6], %5 {strides = array<i32>} : memref<16x8xf32, #tpu.memory_space<vmem>>, vector<16x8xf32>,
    return
  }
  func.func @transform_0(%arg0: i32) -> (i32, i32) {
    %c0_i32 = arith.constant 0 : i32
    %c0_i32_0 = arith.constant 0 : i32
    return %arg0, %c0_i32 : i32, i32
  }
  func.func @transform_1(%arg0: i32) -> (i32, i32) {
    %c0_i32 = arith.constant 0 : i32
    %c0_i32_0 = arith.constant 0 : i32
    %c0_i32_1 = arith.constant 0 : i32
    return %c0_i32, %c0_i32_0 : i32, i32
  }
  func.func @transform_2(%arg0: i32) -> (i32, i32) {
    %c0_i32 = arith.constant 0 : i32
    %c0_i32_0 = arith.constant 0 : i32
    %c0_i32_1 = arith.constant 0 : i32
    return %c0_i32, %c0_i32_0 : i32, i32
  }
  func.func @transform_3(%arg0: i32) -> (i32, i32) {
    %c0_i32 = arith.constant 0 : i32
    %c0_i32_0 = arith.constant 0 : i32
    return %arg0, %c0_i32 : i32, i32
  }
}

</mosaic_0001>

<llo_original>
// kernel: discriminator_forward.4
$region0: #{discriminator_forward.4}
  #allocation0 [shape = 'u32[]', space=smem, size = 0x4, offset = 0x4, fixed_abs, tag = 'smem constant byte address 0x4 - core index']
  #allocation1 [shape = 'u32[144,128]{1,0:T(1,128)}', space=vmem, size = 0x12000, scoped, tag = 'internal scratch']
  %s0 = inlined_call_operand.vmem [shape: bf16[400,25], index: 0, kind: input, shape index: {}]
  %s1 = inlined_call_operand.vmem [shape: bf16[25,8], index: 1, kind: input, shape index: {}]
  %s2 = inlined_call_operand.vmem [shape: f32[1,8], index: 2, kind: input, shape index: {}]
  %s3 = inlined_call_operand.vmem [shape: f32[400,8], index: 3, kind: output, shape index: {}]
  %s4 = sld [smem:[#allocation0]]
  $region22: #{discriminator_forward.4} parent=0
    _
  %s6 = ssub.s32 1, %s4
  %s7 = scalar_select 0, %s6, %s4
  // Predicated region
  $region2: #{discriminator_forward.4} parent=0 // pred_check
    _
  $region3: #{discriminator_forward.4} parent=0 // pred_check_branch
    %9 = sbr.rel (0) target = $region5
  $region4: #{discriminator_forward.4} parent=0 // pred_region
    _
  $region5: #{discriminator_forward.4} parent=0 // pred_fallthru
    _
  // Predicated region
  $region6: #{discriminator_forward.4} parent=0 // pred_check
    _
  $region7: #{discriminator_forward.4} parent=0 // pred_check_branch
    %11 = sbr.rel (0) target = $region9
  $region8: #{discriminator_forward.4} parent=0 // pred_region
    _
  $region9: #{discriminator_forward.4} parent=0 // pred_fallthru
    _
  // Predicated region
  $region10: #{discriminator_forward.4} parent=0 // pred_check
    _
  $region11: #{discriminator_forward.4} parent=0 // pred_check_branch
    %13 = sbr.rel (0) target = $region13
  $region12: #{discriminator_forward.4} parent=0 // pred_region
    _
  $region13: #{discriminator_forward.4} parent=0 // pred_fallthru
    _
  %v15 = vld [vmem:[%s0] sm:$0xf]
  %v16 = vld [vmem:[%s0 + $0x4] sm:$0xf]
  %v17 = vld [vmem:[%s0 + $0x8] sm:$0xf]
  %v18 = vld [vmem:[%s0 + $0xc] sm:$0xf]
  %v19 = vld [vmem:[%s0 + $0x10] sm:$0xf]
  %v20 = vld [vmem:[%s0 + $0x14] sm:$0xf]
  %v21 = vld [vmem:[%s0 + $0x18] sm:$0xf]
  %v22 = vld [vmem:[%s0 + $0x1c] sm:$0xf]
  %v23 = vld [vmem:[%s0 + $0x20] sm:$0xf]
  %v24 = vld [vmem:[%s0 + $0x24] sm:$0xf]
  %v25 = vld [vmem:[%s0 + $0x28] sm:$0xf]
  %v26 = vld [vmem:[%s0 + $0x2c] sm:$0xf]
  %v27 = vld [vmem:[%s0 + $0x30] sm:$0xf]
  %v28 = vld [vmem:[%s0 + $0x34] sm:$0xf]
  %v29 = vld [vmem:[%s0 + $0x38] sm:$0xf]
  %v30 = vld [vmem:[%s0 + $0x3c] sm:$0xf]
  %v31 = vld [vmem:[%s0 + $0x40] sm:$0xf]
  %v32 = vld [vmem:[%s0 + $0x44] sm:$0xf]
  %v33 = vld [vmem:[%s0 + $0x48] sm:$0xf]
  %v34 = vld [vmem:[%s0 + $0x4c] sm:$0xf]
  %v35 = vld [vmem:[%s0 + $0x50] sm:$0xf]
  %v36 = vld [vmem:[%s0 + $0x54] sm:$0xf]
  %v37 = vld [vmem:[%s0 + $0x58] sm:$0xf]
  %v38 = vld [vmem:[%s0 + $0x5c] sm:$0xf]
  %v39 = vld [vmem:[%s0 + $0x60] sm:$0xf]
  %v40 = vld [vmem:[%s0 + $0x64] sm:$0xf]
  %v41 = vld [vmem:[%s0 + $0x68] sm:$0xf]
  %v42 = vld [vmem:[%s0 + $0x6c] sm:$0xf]
  %v43 = vld [vmem:[%s0 + $0x70] sm:$0xf]
  %v44 = vld [vmem:[%s0 + $0x74] sm:$0xf]
  %v45 = vld [vmem:[%s0 + $0x78] sm:$0xf]
  %v46 = vld [vmem:[%s0 + $0x7c] sm:$0xf]
  %v47 = vld [vmem:[%s0 + $0x80] sm:$0xf]
  %v48 = vld [vmem:[%s0 + $0x84] sm:$0xf]
  %v49 = vld [vmem:[%s0 + $0x88] sm:$0xf]
  %v50 = vld [vmem:[%s0 + $0x8c] sm:$0xf]
  %v51 = vld [vmem:[%s0 + $0x90] sm:$0xf]
  %v52 = vld [vmem:[%s0 + $0x94] sm:$0xf]
  %v53 = vld [vmem:[%s0 + $0x98] sm:$0xf]
  %v54 = vld [vmem:[%s0 + $0x9c] sm:$0xf]
  %v55 = vld [vmem:[%s0 + $0xa0] sm:$0xf]
  %v56 = vld [vmem:[%s0 + $0xa4] sm:$0xf]
  %v57 = vld [vmem:[%s0 + $0xa8] sm:$0xf]
  %v58 = vld [vmem:[%s0 + $0xac] sm:$0xf]
  %v59 = vld [vmem:[%s0 + $0xb0] sm:$0xf]
  %v60 = vld [vmem:[%s0 + $0xb4] sm:$0xf]
  %v61 = vld [vmem:[%s0 + $0xb8] sm:$0xf]
  %v62 = vld [vmem:[%s0 + $0xbc] sm:$0xf]
  %v63 = vld [vmem:[%s0 + $0xc0] sm:$0xf]
  %v64 = vld [vmem:[%s0 + $0xc4] sm:$0xf]
  %v65 = vld [vmem:[%s1] sm:$0xf]
  %v66 = vld [vmem:[%s1 + $0x4] sm:$0xf]
  %v67 = vld [vmem:[%s1 + $0x8] sm:$0xf]
  %v68 = vld [vmem:[%s1 + $0xc] sm:$0x1]
  %v69 = vld [vmem:[%s2] sm:$0x1]
  %v71 = vlaneseq
  %v72 = vshrl.u32 %v71, 7
  %v73 = vsub.s32 0, %v72
  %v74 = vrot.slane %v69, %v73
  %v126 = vunpack.c.l.b16 %v15
  %v127 = vunpack.c.l.b16 %v16
  %v128 = vunpack.c.l.b16 %v17
  %v129 = vunpack.c.l.b16 %v18
  %v130 = vunpack.c.l.b16 %v19
  %v131 = vunpack.c.l.b16 %v20
  %v132 = vunpack.c.l.b16 %v21
  %v133 = vunpack.c.l.b16 %v22
  %v134 = vunpack.c.l.b16 %v23
  %v135 = vunpack.c.l.b16 %v24
  %v136 = vunpack.c.l.b16 %v25
  %v137 = vunpack.c.l.b16 %v26
  %v138 = vunpack.c.l.b16 %v27
  %v139 = vunpack.c.l.b16 %v28
  %v140 = vunpack.c.l.b16 %v29
  %v141 = vunpack.c.l.b16 %v30
  %v142 = vunpack.c.l.b16 %v31
  %v143 = vunpack.c.l.b16 %v32
  %v144 = vunpack.c.l.b16 %v33
  %v145 = vunpack.c.l.b16 %v34
  %v146 = vunpack.c.l.b16 %v35
  %v147 = vunpack.c.l.b16 %v36
  %v148 = vunpack.c.l.b16 %v37
  %v149 = vunpack.c.l.b16 %v38
  %v150 = vunpack.c.l.b16 %v39
  %v151 = vunpack.c.l.b16 %v40
  %v152 = vunpack.c.l.b16 %v41
  %v153 = vunpack.c.l.b16 %v42
  %v154 = vunpack.c.l.b16 %v43
  %v155 = vunpack.c.l.b16 %v44
  %v156 = vunpack.c.l.b16 %v45
  %v157 = vunpack.c.l.b16 %v46
  %v158 = vunpack.c.l.b16 %v47
  %v159 = vunpack.c.l.b16 %v48
  %v160 = vunpack.c.l.b16 %v49
  %v161 = vunpack.c.l.b16 %v50
  %v162 = vunpack.c.l.b16 %v51
  %v163 = vunpack.c.l.b16 %v52
  %v164 = vunpack.c.l.b16 %v53
  %v165 = vunpack.c.l.b16 %v54
  %v166 = vunpack.c.l.b16 %v55
  %v167 = vunpack.c.l.b16 %v56
  %v168 = vunpack.c.l.b16 %v57
  %v169 = vunpack.c.l.b16 %v58
  %v170 = vunpack.c.l.b16 %v59
  %v171 = vunpack.c.l.b16 %v60
  %v172 = vunpack.c.l.b16 %v61
  %v173 = vunpack.c.l.b16 %v62
  %v174 = vunpack.c.l.b16 %v63
  %v175 = vunpack.c.l.b16 %v64
  %v176 = vpack.c.b16 %v127, %v126
  %v177 = vpack.c.b16 %v129, %v128
  %v178 = vpack.c.b16 %v131, %v130
  %v179 = vpack.c.b16 %v133, %v132
  %v180 = vpack.c.b16 %v135, %v134
  %v181 = vpack.c.b16 %v137, %v136
  %v182 = vpack.c.b16 %v139, %v138
  %v183 = vpack.c.b16 %v141, %v140
  %v184 = vpack.c.b16 %v143, %v142
  %v185 = vpack.c.b16 %v145, %v144
  %v186 = vpack.c.b16 %v147, %v146
  %v187 = vpack.c.b16 %v149, %v148
  %v188 = vpack.c.b16 %v151, %v150
  %v189 = vpack.c.b16 %v153, %v152
  %v190 = vpack.c.b16 %v155, %v154
  %v191 = vpack.c.b16 %v157, %v156
  %v192 = vpack.c.b16 %v159, %v158
  %v193 = vpack.c.b16 %v161, %v160
  %v194 = vpack.c.b16 %v163, %v162
  %v195 = vpack.c.b16 %v165, %v164
  %v196 = vpack.c.b16 %v167, %v166
  %v197 = vpack.c.b16 %v169, %v168
  %v198 = vpack.c.b16 %v171, %v170
  %v199 = vpack.c.b16 %v173, %v172
  %v200 = vpack.c.b16 %v175, %v174
  %v205 = vunpack.c.l.b16 %v65
  %v206 = vunpack.c.l.b16 %v66
  %v207 = vunpack.c.l.b16 %v67
  %v208 = vunpack.c.l.b16 %v68
  %v209 = vpack.c.b16 %v206, %v205
  %v210 = vpack.c.b16 %v208, %v207
  %vm212 = vcmask 203776
  %v214 = vsel %vm212, %v176, 0
  %v217 = vsel %vm212, %v177, 0
  %v220 = vsel %vm212, %v178, 0
  %v223 = vsel %vm212, %v179, 0
  %v226 = vsel %vm212, %v180, 0
  %v229 = vsel %vm212, %v181, 0
  %v232 = vsel %vm212, %v182, 0
  %v235 = vsel %vm212, %v183, 0
  %v238 = vsel %vm212, %v184, 0
  %v241 = vsel %vm212, %v185, 0
  %v244 = vsel %vm212, %v186, 0
  %v247 = vsel %vm212, %v187, 0
  %v250 = vsel %vm212, %v188, 0
  %v253 = vsel %vm212, %v189, 0
  %v256 = vsel %vm212, %v190, 0
  %v259 = vsel %vm212, %v191, 0
  %v262 = vsel %vm212, %v192, 0
  %v265 = vsel %vm212, %v193, 0
  %v268 = vsel %vm212, %v194, 0
  %v271 = vsel %vm212, %v195, 0
  %v274 = vsel %vm212, %v196, 0
  %v277 = vsel %vm212, %v197, 0
  %v280 = vsel %vm212, %v198, 0
  %v283 = vsel %vm212, %v199, 0
  %v286 = vsel %vm212, %v200, 0
  %vm288 = vcmask 1043456
  %vm289 = vcmask 1044480
  %v290 = vsel %vm288, 4294967295, 65535
  %v291 = vsel %vm289, %v290, 0
  %v293 = vand.u32 %v210, %v291
  %295 = vmatprep.subr.bf16.mxu0 0
  %296 = vmatpush1.bf16.msra.mxu0 %v209
  %297 = vmatprep.subr.bf16.mxu0 0
  %298 = vmatpush1.bf16.msra.mxu0 %v293
  %299 = vmatprep.subr.bf16.mxu0 0
  %300 = vmatpush1.bf16.msra.mxu0 0
  %301 = vmatprep.subr.bf16.mxu0 0
  %302 = vmatpush1.bf16.msra.mxu0 0
  %303 = vmatprep.subr.bf16.mxu0 0
  %304 = vmatpush1.bf16.msra.mxu0 0
  %305 = vmatprep.subr.bf16.mxu0 0
  %306 = vmatpush1.bf16.msra.mxu0 0
  %307 = vmatprep.subr.bf16.mxu0 0
  %308 = vmatpush1.bf16.msra.mxu0 0
  %309 = vmatprep.subr.bf16.mxu0 0
  %310 = vmatpush1.bf16.msra.mxu0 0
  %311 = vmatprep.subr.bf16.mxu0 0
  %312 = vmatpush1.bf16.msra.mxu0 0
  %313 = vmatprep.subr.bf16.mxu0 0
  %314 = vmatpush1.bf16.msra.mxu0 0
  %315 = vmatprep.subr.bf16.mxu0 0
  %316 = vmatpush1.bf16.msra.mxu0 0
  %317 = vmatprep.subr.bf16.mxu0 0
  %318 = vmatpush1.bf16.msra.mxu0 0
  %319 = vmatprep.subr.bf16.mxu0 0
  %320 = vmatpush1.bf16.msra.mxu0 0
  %321 = vmatprep.subr.bf16.mxu0 0
  %322 = vmatpush1.bf16.msra.mxu0 0
  %323 = vmatprep.subr.bf16.mxu0 0
  %324 = vmatpush1.bf16.msra.mxu0 0
  %325 = vmatprep.subr.bf16.mxu0 0
  %326 = vmatpush1.bf16.msra.mxu0 0
  %327 = vmatprep.mubr.bf16.mxu0 0
  %328 = vmatmul.mubr.bf16.gmra.mrb[0].mxu0 %v214
  %v329 = vpop.f32.mrb[0].mxu0
  %v330 = vadd.f32 %v74, %v329
  %v331 = vpop.f32.mrb[0].mxu0
  %v332 = vpop.f32.mrb[0].mxu0
  %v333 = vadd.f32 %v74, %v332
  %v334 = vpop.f32.mrb[0].mxu0
  %335 = vmatprep.mubr.bf16.mxu0 0
  %336 = vmatmul.mubr.bf16.gmra.mrb[0].mxu0 %v217
  %v337 = vpop.f32.mrb[0].mxu0
  %v338 = vadd.f32 %v74, %v337
  %v339 = vpop.f32.mrb[0].mxu0
  %v340 = vpop.f32.mrb[0].mxu0
  %v341 = vadd.f32 %v74, %v340
  %v342 = vpop.f32.mrb[0].mxu0
  %343 = vmatprep.mubr.bf16.mxu0 0
  %344 = vmatmul.mubr.bf16.gmra.mrb[0].mxu0 %v220
  %v345 = vpop.f32.mrb[0].mxu0
  %v346 = vadd.f32 %v74, %v345
  %v347 = vpop.f32.mrb[0].mxu0
  %v348 = vpop.f32.mrb[0].mxu0
  %v349 = vadd.f32 %v74, %v348
  %v350 = vpop.f32.mrb[0].mxu0
  %351 = vmatprep.mubr.bf16.mxu0 0
  %352 = vmatmul.mubr.bf16.gmra.mrb[0].mxu0 %v223
  %v353 = vpop.f32.mrb[0].mxu0
  %v354 = vadd.f32 %v74, %v353
  %v355 = vpop.f32.mrb[0].mxu0
  %v356 = vpop.f32.mrb[0].mxu0
  %v357 = vadd.f32 %v74, %v356
  %v358 = vpop.f32.mrb[0].mxu0
  %359 = vmatprep.mubr.bf16.mxu0 0
  %360 = vmatmul.mubr.bf16.gmra.mrb[0].mxu0 %v226
  %v361 = vpop.f32.mrb[0].mxu0
  %v362 = vadd.f32 %v74, %v361
  %v363 = vpop.f32.mrb[0].mxu0
  %v364 = vpop.f32.mrb[0].mxu0
  %v365 = vadd.f32 %v74, %v364
  %v366 = vpop.f32.mrb[0].mxu0
  %367 = vmatprep.mubr.bf16.mxu0 0
  %368 = vmatmul.mubr.bf16.gmra.mrb[0].mxu0 %v229
  %v369 = vpop.f32.mrb[0].mxu0
  %v370 = vadd.f32 %v74, %v369
  %v371 = vpop.f32.mrb[0].mxu0
  %v372 = vpop.f32.mrb[0].mxu0
  %v373 = vadd.f32 %v74, %v372
  %v374 = vpop.f32.mrb[0].mxu0
  %375 = vmatprep.mubr.bf16.mxu0 0
  %376 = vmatmul.mubr.bf16.gmra.mrb[0].mxu0 %v232
  %v377 = vpop.f32.mrb[0].mxu0
  %v378 = vadd.f32 %v74, %v377
  %v379 = vpop.f32.mrb[0].mxu0
  %v380 = vpop.f32.mrb[0].mxu0
  %v381 = vadd.f32 %v74, %v380
  %v382 = vpop.f32.mrb[0].mxu0
  %383 = vmatprep.mubr.bf16.mxu0 0
  %384 = vmatmul.mubr.bf16.gmra.mrb[0].mxu0 %v235
  %v385 = vpop.f32.mrb[0].mxu0
  %v386 = vadd.f32 %v74, %v385
  %v387 = vpop.f32.mrb[0].mxu0
  %v388 = vpop.f32.mrb[0].mxu0
  %v389 = vadd.f32 %v74, %v388
  %v390 = vpop.f32.mrb[0].mxu0
  %391 = vmatprep.mubr.bf16.mxu0 0
  %392 = vmatmul.mubr.bf16.gmra.mrb[0].mxu0 %v238
  %v393 = vpop.f32.mrb[0].mxu0
  %v394 = vadd.f32 %v74, %v393
  %v395 = vpop.f32.mrb[0].mxu0
  %v396 = vpop.f32.mrb[0].mxu0
  %v397 = vadd.f32 %v74, %v396
  %v398 = vpop.f32.mrb[0].mxu0
  %399 = vmatprep.mubr.bf16.mxu0 0
  %400 = vmatmul.mubr.bf16.gmra.mrb[0].mxu0 %v241
  %v401 = vpop.f32.mrb[0].mxu0
  %v402 = vadd.f32 %v74, %v401
  %v403 = vpop.f32.mrb[0].mxu0
  %v404 = vpop.f32.mrb[0].mxu0
  %v405 = vadd.f32 %v74, %v404
  %v406 = vpop.f32.mrb[0].mxu0
  %407 = vmatprep.mubr.bf16.mxu0 0
  %408 = vmatmul.mubr.bf16.gmra.mrb[0].mxu0 %v244
  %v409 = vpop.f32.mrb[0].mxu0
  %v410 = vadd.f32 %v74, %v409
  %v411 = vpop.f32.mrb[0].mxu0
  %v412 = vpop.f32.mrb[0].mxu0
  %v413 = vadd.f32 %v74, %v412
  %v414 = vpop.f32.mrb[0].mxu0
  %415 = vmatprep.mubr.bf16.mxu0 0
  %416 = vmatmul.mubr.bf16.gmra.mrb[0].mxu0 %v247
  %v417 = vpop.f32.mrb[0].mxu0
  %v418 = vadd.f32 %v74, %v417
  %v419 = vpop.f32.mrb[0].mxu0
  %v420 = vpop.f32.mrb[0].mxu0
  %v421 = vadd.f32 %v74, %v420
  %v422 = vpop.f32.mrb[0].mxu0
  %423 = vmatprep.mubr.bf16.mxu0 0
  %424 = vmatmul.mubr.bf16.gmra.mrb[0].mxu0 %v250
  %v425 = vpop.f32.mrb[0].mxu0
  %v426 = vadd.f32 %v74, %v425
  %v427 = vpop.f32.mrb[0].mxu0
  %v428 = vpop.f32.mrb[0].mxu0
  %v429 = vadd.f32 %v74, %v428
  %v430 = vpop.f32.mrb[0].mxu0
  %431 = vmatprep.mubr.bf16.mxu0 0
  %432 = vmatmul.mubr.bf16.gmra.mrb[0].mxu0 %v253
  %v433 = vpop.f32.mrb[0].mxu0
  %v434 = vadd.f32 %v74, %v433
  %v435 = vpop.f32.mrb[0].mxu0
  %v436 = vpop.f32.mrb[0].mxu0
  %v437 = vadd.f32 %v74, %v436
  %v438 = vpop.f32.mrb[0].mxu0
  %439 = vmatprep.mubr.bf16.mxu0 0
  %440 = vmatmul.mubr.bf16.gmra.mrb[0].mxu0 %v256
  %v441 = vpop.f32.mrb[0].mxu0
  %v442 = vadd.f32 %v74, %v441
  %v443 = vpop.f32.mrb[0].mxu0
  %v444 = vpop.f32.mrb[0].mxu0
  %v445 = vadd.f32 %v74, %v444
  %v446 = vpop.f32.mrb[0].mxu0
  %447 = vmatprep.mubr.bf16.mxu0 0
  %448 = vmatmul.mubr.bf16.gmra.mrb[0].mxu0 %v259
  %v449 = vpop.f32.mrb[0].mxu0
  %v450 = vadd.f32 %v74, %v449
  %v451 = vpop.f32.mrb[0].mxu0
  %v452 = vpop.f32.mrb[0].mxu0
  %v453 = vadd.f32 %v74, %v452
  %v454 = vpop.f32.mrb[0].mxu0
  %455 = vmatprep.mubr.bf16.mxu0 0
  %456 = vmatmul.mubr.bf16.gmra.mrb[0].mxu0 %v262
  %v457 = vpop.f32.mrb[0].mxu0
  %v458 = vadd.f32 %v74, %v457
  %v459 = vpop.f32.mrb[0].mxu0
  %v460 = vpop.f32.mrb[0].mxu0
  %v461 = vadd.f32 %v74, %v460
  %v462 = vpop.f32.mrb[0].mxu0
  %463 = vmatprep.mubr.bf16.mxu0 0
  %464 = vmatmul.mubr.bf16.gmra.mrb[0].mxu0 %v265
  %v465 = vpop.f32.mrb[0].mxu0
  %v466 = vadd.f32 %v74, %v465
  %v467 = vpop.f32.mrb[0].mxu0
  %v468 = vpop.f32.mrb[0].mxu0
  %v469 = vadd.f32 %v74, %v468
  %v470 = vpop.f32.mrb[0].mxu0
  %471 = vmatprep.mubr.bf16.mxu0 0
  %472 = vmatmul.mubr.bf16.gmra.mrb[0].mxu0 %v268
  %v473 = vpop.f32.mrb[0].mxu0
  %v474 = vadd.f32 %v74, %v473
  %v475 = vpop.f32.mrb[0].mxu0
  %v476 = vpop.f32.mrb[0].mxu0
  %v477 = vadd.f32 %v74, %v476
  %v478 = vpop.f32.mrb[0].mxu0
  %479 = vmatprep.mubr.bf16.mxu0 0
  %480 = vmatmul.mubr.bf16.gmra.mrb[0].mxu0 %v271
  %v481 = vpop.f32.mrb[0].mxu0
  %v482 = vadd.f32 %v74, %v481
  %v483 = vpop.f32.mrb[0].mxu0
  %v484 = vpop.f32.mrb[0].mxu0
  %v485 = vadd.f32 %v74, %v484
  %v486 = vpop.f32.mrb[0].mxu0
  %487 = vmatprep.mubr.bf16.mxu0 0
  %488 = vmatmul.mubr.bf16.gmra.mrb[0].mxu0 %v274
  %v489 = vpop.f32.mrb[0].mxu0
  %v490 = vadd.f32 %v74, %v489
  %v491 = vpop.f32.mrb[0].mxu0
  %v492 = vpop.f32.mrb[0].mxu0
  %v493 = vadd.f32 %v74, %v492
  %v494 = vpop.f32.mrb[0].mxu0
  %495 = vmatprep.mubr.bf16.mxu0 0
  %496 = vmatmul.mubr.bf16.gmra.mrb[0].mxu0 %v277
  %v497 = vpop.f32.mrb[0].mxu0
  %v498 = vadd.f32 %v74, %v497
  %v499 = vpop.f32.mrb[0].mxu0
  %v500 = vpop.f32.mrb[0].mxu0
  %v501 = vadd.f32 %v74, %v500
  %v502 = vpop.f32.mrb[0].mxu0
  %503 = vmatprep.mubr.bf16.mxu0 0
  %504 = vmatmul.mubr.bf16.gmra.mrb[0].mxu0 %v280
  %v505 = vpop.f32.mrb[0].mxu0
  %v506 = vadd.f32 %v74, %v505
  %v507 = vpop.f32.mrb[0].mxu0
  %v508 = vpop.f32.mrb[0].mxu0
  %v509 = vadd.f32 %v74, %v508
  %v510 = vpop.f32.mrb[0].mxu0
  %511 = vmatprep.mubr.bf16.mxu0 0
  %512 = vmatmul.mubr.bf16.gmra.mrb[0].mxu0 %v283
  %v513 = vpop.f32.mrb[0].mxu0
  %v514 = vadd.f32 %v74, %v513
  %v515 = vpop.f32.mrb[0].mxu0
  %v516 = vpop.f32.mrb[0].mxu0
  %v517 = vadd.f32 %v74, %v516
  %v518 = vpop.f32.mrb[0].mxu0
  %519 = vmatprep.mubr.bf16.mxu0 0
  %520 = vmatmul.mubr.bf16.gmra.mrb[0].mxu0 %v286
  %v521 = vpop.f32.mrb[0].mxu0
  %v522 = vadd.f32 %v74, %v521
  %v523 = vpop.f32.mrb[0].mxu0
  %v524 = vpop.f32.mrb[0].mxu0
  %v525 = vadd.f32 %v74, %v524
  %v526 = vpop.f32.mrb[0].mxu0
  %527 = vdwg.mxu0
  %v528 = vmax.f32 %v330, 0.0
  %v529 = vmax.f32 %v333, 0.0
  %v530 = vmax.f32 %v338, 0.0
  %v531 = vmax.f32 %v341, 0.0
  %v532 = vmax.f32 %v346, 0.0
  %v533 = vmax.f32 %v349, 0.0
  %v534 = vmax.f32 %v354, 0.0
  %v535 = vmax.f32 %v357, 0.0
  %v536 = vmax.f32 %v362, 0.0
  %v537 = vmax.f32 %v365, 0.0
  %v538 = vmax.f32 %v370, 0.0
  %v539 = vmax.f32 %v373, 0.0
  %v540 = vmax.f32 %v378, 0.0
  %v541 = vmax.f32 %v381, 0.0
  %v542 = vmax.f32 %v386, 0.0
  %v543 = vmax.f32 %v389, 0.0
  %v544 = vmax.f32 %v394, 0.0
  %v545 = vmax.f32 %v397, 0.0
  %v546 = vmax.f32 %v402, 0.0
  %v547 = vmax.f32 %v405, 0.0
  %v548 = vmax.f32 %v410, 0.0
  %v549 = vmax.f32 %v413, 0.0
  %v550 = vmax.f32 %v418, 0.0
  %v551 = vmax.f32 %v421, 0.0
  %v552 = vmax.f32 %v426, 0.0
  %v553 = vmax.f32 %v429, 0.0
  %v554 = vmax.f32 %v434, 0.0
  %v555 = vmax.f32 %v437, 0.0
  %v556 = vmax.f32 %v442, 0.0
  %v557 = vmax.f32 %v445, 0.0
  %v558 = vmax.f32 %v450, 0.0
  %v559 = vmax.f32 %v453, 0.0
  %v560 = vmax.f32 %v458, 0.0
  %v561 = vmax.f32 %v461, 0.0
  %v562 = vmax.f32 %v466, 0.0
  %v563 = vmax.f32 %v469, 0.0
  %v564 = vmax.f32 %v474, 0.0
  %v565 = vmax.f32 %v477, 0.0
  %v566 = vmax.f32 %v482, 0.0
  %v567 = vmax.f32 %v485, 0.0
  %v568 = vmax.f32 %v490, 0.0
  %v569 = vmax.f32 %v493, 0.0
  %v570 = vmax.f32 %v498, 0.0
  %v571 = vmax.f32 %v501, 0.0
  %v572 = vmax.f32 %v506, 0.0
  %v573 = vmax.f32 %v509, 0.0
  %v574 = vmax.f32 %v514, 0.0
  %v575 = vmax.f32 %v517, 0.0
  %v576 = vmax.f32 %v522, 0.0
  %v577 = vmax.f32 %v525, 0.0
  %vm578 = vcmask 64512
  %579 = vst.msk [vmem:[%s3] sm:$0xff] %vm578, %v528
  %580 = vst.msk [vmem:[%s3 + $0x8] sm:$0xff] %vm578, %v529
  %581 = vst.msk [vmem:[%s3 + $0x10] sm:$0xff] %vm578, %v530
  %582 = vst.msk [vmem:[%s3 + $0x18] sm:$0xff] %vm578, %v531
  %583 = vst.msk [vmem:[%s3 + $0x20] sm:$0xff] %vm578, %v532
  %584 = vst.msk [vmem:[%s3 + $0x28] sm:$0xff] %vm578, %v533
  %585 = vst.msk [vmem:[%s3 + $0x30] sm:$0xff] %vm578, %v534
  %586 = vst.msk [vmem:[%s3 + $0x38] sm:$0xff] %vm578, %v535
  %587 = vst.msk [vmem:[%s3 + $0x40] sm:$0xff] %vm578, %v536
  %588 = vst.msk [vmem:[%s3 + $0x48] sm:$0xff] %vm578, %v537
  %589 = vst.msk [vmem:[%s3 + $0x50] sm:$0xff] %vm578, %v538
  %590 = vst.msk [vmem:[%s3 + $0x58] sm:$0xff] %vm578, %v539
  %591 = vst.msk [vmem:[%s3 + $0x60] sm:$0xff] %vm578, %v540
  %592 = vst.msk [vmem:[%s3 + $0x68] sm:$0xff] %vm578, %v541
  %593 = vst.msk [vmem:[%s3 + $0x70] sm:$0xff] %vm578, %v542
  %594 = vst.msk [vmem:[%s3 + $0x78] sm:$0xff] %vm578, %v543
  %595 = vst.msk [vmem:[%s3 + $0x80] sm:$0xff] %vm578, %v544
  %596 = vst.msk [vmem:[%s3 + $0x88] sm:$0xff] %vm578, %v545
  %597 = vst.msk [vmem:[%s3 + $0x90] sm:$0xff] %vm578, %v546
  %598 = vst.msk [vmem:[%s3 + $0x98] sm:$0xff] %vm578, %v547
  %599 = vst.msk [vmem:[%s3 + $0xa0] sm:$0xff] %vm578, %v548
  %600 = vst.msk [vmem:[%s3 + $0xa8] sm:$0xff] %vm578, %v549
  %601 = vst.msk [vmem:[%s3 + $0xb0] sm:$0xff] %vm578, %v550
  %602 = vst.msk [vmem:[%s3 + $0xb8] sm:$0xff] %vm578, %v551
  %603 = vst.msk [vmem:[%s3 + $0xc0] sm:$0xff] %vm578, %v552
  %604 = vst.msk [vmem:[%s3 + $0xc8] sm:$0xff] %vm578, %v553
  %605 = vst.msk [vmem:[%s3 + $0xd0] sm:$0xff] %vm578, %v554
  %606 = vst.msk [vmem:[%s3 + $0xd8] sm:$0xff] %vm578, %v555
  %607 = vst.msk [vmem:[%s3 + $0xe0] sm:$0xff] %vm578, %v556
  %608 = vst.msk [vmem:[%s3 + $0xe8] sm:$0xff] %vm578, %v557
  %609 = vst.msk [vmem:[%s3 + $0xf0] sm:$0xff] %vm578, %v558
  %610 = vst.msk [vmem:[%s3 + $0xf8] sm:$0xff] %vm578, %v559
  %611 = vst.msk [vmem:[%s3 + $0x100] sm:$0xff] %vm578, %v560
  %612 = vst.msk [vmem:[%s3 + $0x108] sm:$0xff] %vm578, %v561
  %613 = vst.msk [vmem:[%s3 + $0x110] sm:$0xff] %vm578, %v562
  %614 = vst.msk [vmem:[%s3 + $0x118] sm:$0xff] %vm578, %v563
  %615 = vst.msk [vmem:[%s3 + $0x120] sm:$0xff] %vm578, %v564
  %616 = vst.msk [vmem:[%s3 + $0x128] sm:$0xff] %vm578, %v565
  %617 = vst.msk [vmem:[%s3 + $0x130] sm:$0xff] %vm578, %v566
  %618 = vst.msk [vmem:[%s3 + $0x138] sm:$0xff] %vm578, %v567
  %619 = vst.msk [vmem:[%s3 + $0x140] sm:$0xff] %vm578, %v568
  %620 = vst.msk [vmem:[%s3 + $0x148] sm:$0xff] %vm578, %v569
  %621 = vst.msk [vmem:[%s3 + $0x150] sm:$0xff] %vm578, %v570
  %622 = vst.msk [vmem:[%s3 + $0x158] sm:$0xff] %vm578, %v571
  %623 = vst.msk [vmem:[%s3 + $0x160] sm:$0xff] %vm578, %v572
  %624 = vst.msk [vmem:[%s3 + $0x168] sm:$0xff] %vm578, %v573
  %625 = vst.msk [vmem:[%s3 + $0x170] sm:$0xff] %vm578, %v574
  %626 = vst.msk [vmem:[%s3 + $0x178] sm:$0xff] %vm578, %v575
  %627 = vst.msk [vmem:[%s3 + $0x180] sm:$0xff] %vm578, %v576
  %628 = vst.msk [vmem:[%s3 + $0x188] sm:$0xff] %vm578, %v577
  // Predicated region
  $region14: #{discriminator_forward.4} parent=0 // pred_check
    _
  $region15: #{discriminator_forward.4} parent=0 // pred_check_branch
    %630 = sbr.rel (0) target = $region17
  $region16: #{discriminator_forward.4} parent=0 // pred_region
    _
  $region17: #{discriminator_forward.4} parent=0 // pred_fallthru
    _
  // Predicated region
  $region18: #{discriminator_forward.4} parent=0 // pred_check
    _
  $region19: #{discriminator_forward.4} parent=0 // pred_check_branch
    %632 = sbr.rel (0) target = $region21
  $region20: #{discriminator_forward.4} parent=0 // pred_region
    _
  $region21: #{discriminator_forward.4} parent=0 // pred_fallthru
    _

// kernel: discriminator_forward.5
$region0: #{discriminator_forward.5}
  #allocation0 [shape = 'u32[]', space=smem, size = 0x4, offset = 0x4, fixed_abs, tag = 'smem constant byte address 0x4 - core index']
  #allocation1 [shape = 'u32[144,128]{1,0:T(1,128)}', space=vmem, size = 0x12000, scoped, tag = 'internal scratch']
  %s0 = inlined_call_operand.vmem [shape: bf16[112,200], index: 0, kind: input, shape index: {}]
  %s1 = inlined_call_operand.vmem [shape: bf16[200,16], index: 1, kind: input, shape index: {}]
  %s2 = inlined_call_operand.vmem [shape: f32[1,16], index: 2, kind: input, shape index: {}]
  %s3 = inlined_call_operand.vmem [shape: f32[112,16], index: 3, kind: output, shape index: {}]
  %s4 = sld [smem:[#allocation0]]
  $region22: #{discriminator_forward.5} parent=0
    _
  %s6 = ssub.s32 1, %s4
  %s7 = scalar_select 0, %s6, %s4
  // Predicated region
  $region2: #{discriminator_forward.5} parent=0 // pred_check
    _
  $region3: #{discriminator_forward.5} parent=0 // pred_check_branch
    %9 = sbr.rel (0) target = $region5
  $region4: #{discriminator_forward.5} parent=0 // pred_region
    _
  $region5: #{discriminator_forward.5} parent=0 // pred_fallthru
    _
  // Predicated region
  $region6: #{discriminator_forward.5} parent=0 // pred_check
    _
  $region7: #{discriminator_forward.5} parent=0 // pred_check_branch
    %11 = sbr.rel (0) target = $region9
  $region8: #{discriminator_forward.5} parent=0 // pred_region
    _
  $region9: #{discriminator_forward.5} parent=0 // pred_fallthru
    _
  // Predicated region
  $region10: #{discriminator_forward.5} parent=0 // pred_check
    _
  $region11: #{discriminator_forward.5} parent=0 // pred_check_branch
    %13 = sbr.rel (0) target = $region13
  $region12: #{discriminator_forward.5} parent=0 // pred_region
    _
  $region13: #{discriminator_forward.5} parent=0 // pred_fallthru
    _
  %v15 = vld [vmem:[%s0] sm:$0xff]
  %v16 = vld [vmem:[%s0 + $0x8] sm:$0xff]
  %v17 = vld [vmem:[%s0 + $0x10] sm:$0xff]
  %v18 = vld [vmem:[%s0 + $0x18] sm:$0xff]
  %v19 = vld [vmem:[%s0 + $0x20] sm:$0xff]
  %v20 = vld [vmem:[%s0 + $0x28] sm:$0xff]
  %v21 = vld [vmem:[%s0 + $0x30] sm:$0xff]
  %v22 = vld [vmem:[%s0 + $0x38] sm:$0xff]
  %v23 = vld [vmem:[%s0 + $0x40] sm:$0xff]
  %v24 = vld [vmem:[%s0 + $0x48] sm:$0xff]
  %v25 = vld [vmem:[%s0 + $0x50] sm:$0xff]
  %v26 = vld [vmem:[%s0 + $0x58] sm:$0xff]
  %v27 = vld [vmem:[%s0 + $0x60] sm:$0xff]
  %v28 = vld [vmem:[%s0 + $0x68] sm:$0xff]
  %v29 = vld [vmem:[%s1] sm:$0xf]
  %v30 = vld [vmem:[%s1 + $0x4] sm:$0xf]
  %v31 = vld [vmem:[%s1 + $0x8] sm:$0xf]
  %v32 = vld [vmem:[%s1 + $0xc] sm:$0xf]
  %v33 = vld [vmem:[%s1 + $0x10] sm:$0xf]
  %v34 = vld [vmem:[%s1 + $0x14] sm:$0xf]
  %v35 = vld [vmem:[%s1 + $0x18] sm:$0xf]
  %v36 = vld [vmem:[%s1 + $0x1c] sm:$0xf]
  %v37 = vld [vmem:[%s1 + $0x20] sm:$0xf]
  %v38 = vld [vmem:[%s1 + $0x24] sm:$0xf]
  %v39 = vld [vmem:[%s1 + $0x28] sm:$0xf]
  %v40 = vld [vmem:[%s1 + $0x2c] sm:$0xf]
  %v41 = vld [vmem:[%s1 + $0x30] sm:$0xf]
  %v42 = vld [vmem:[%s1 + $0x34] sm:$0xf]
  %v43 = vld [vmem:[%s1 + $0x38] sm:$0xf]
  %v44 = vld [vmem:[%s1 + $0x3c] sm:$0xf]
  %v45 = vld [vmem:[%s1 + $0x40] sm:$0xf]
  %v46 = vld [vmem:[%s1 + $0x44] sm:$0xf]
  %v47 = vld [vmem:[%s1 + $0x48] sm:$0xf]
  %v48 = vld [vmem:[%s1 + $0x4c] sm:$0xf]
  %v49 = vld [vmem:[%s1 + $0x50] sm:$0xf]
  %v50 = vld [vmem:[%s1 + $0x54] sm:$0xf]
  %v51 = vld [vmem:[%s1 + $0x58] sm:$0xf]
  %v52 = vld [vmem:[%s1 + $0x5c] sm:$0xf]
  %v53 = vld [vmem:[%s1 + $0x60] sm:$0xf]
  %v54 = vld [vmem:[%s2] sm:$0x1]
  %v56 = vlaneseq
  %v57 = vshrl.u32 %v56, 7
  %v58 = vsub.s32 0, %v57
  %v59 = vrot.slane %v54, %v58
  %v75 = vunpack.c.l.b16 %v15
  %v76 = vunpack.c.h.b16 %v15
  %v77 = vunpack.c.l.b16 %v16
  %v78 = vunpack.c.h.b16 %v16
  %v79 = vunpack.c.l.b16 %v17
  %v80 = vunpack.c.h.b16 %v17
  %v81 = vunpack.c.l.b16 %v18
  %v82 = vunpack.c.h.b16 %v18
  %v83 = vunpack.c.l.b16 %v19
  %v84 = vunpack.c.h.b16 %v19
  %v85 = vunpack.c.l.b16 %v20
  %v86 = vunpack.c.h.b16 %v20
  %v87 = vunpack.c.l.b16 %v21
  %v88 = vunpack.c.h.b16 %v21
  %v89 = vunpack.c.l.b16 %v22
  %v90 = vunpack.c.h.b16 %v22
  %v91 = vunpack.c.l.b16 %v23
  %v92 = vunpack.c.h.b16 %v23
  %v93 = vunpack.c.l.b16 %v24
  %v94 = vunpack.c.h.b16 %v24
  %v95 = vunpack.c.l.b16 %v25
  %v96 = vunpack.c.h.b16 %v25
  %v97 = vunpack.c.l.b16 %v26
  %v98 = vunpack.c.h.b16 %v26
  %v99 = vunpack.c.l.b16 %v27
  %v100 = vunpack.c.h.b16 %v27
  %v101 = vunpack.c.l.b16 %v28
  %v102 = vunpack.c.h.b16 %v28
  %v103 = vpack.c.b16 %v77, %v75
  %v104 = vpack.c.b16 %v78, %v76
  %v105 = vpack.c.b16 %v81, %v79
  %v106 = vpack.c.b16 %v82, %v80
  %v107 = vpack.c.b16 %v85, %v83
  %v108 = vpack.c.b16 %v86, %v84
  %v109 = vpack.c.b16 %v89, %v87
  %v110 = vpack.c.b16 %v90, %v88
  %v111 = vpack.c.b16 %v93, %v91
  %v112 = vpack.c.b16 %v94, %v92
  %v113 = vpack.c.b16 %v97, %v95
  %v114 = vpack.c.b16 %v98, %v96
  %v115 = vpack.c.b16 %v101, %v99
  %v116 = vpack.c.b16 %v102, %v100
  %v149 = vunpack.c.l.b16 %v29
  %v150 = vunpack.c.l.b16 %v30
  %v151 = vunpack.c.l.b16 %v31
  %v152 = vunpack.c.l.b16 %v32
  %v153 = vunpack.c.l.b16 %v33
  %v154 = vunpack.c.l.b16 %v34
  %v155 = vunpack.c.l.b16 %v35
  %v156 = vunpack.c.l.b16 %v36
  %v157 = vunpack.c.l.b16 %v37
  %v158 = vunpack.c.l.b16 %v38
  %v159 = vunpack.c.l.b16 %v39
  %v160 = vunpack.c.l.b16 %v40
  %v161 = vunpack.c.l.b16 %v41
  %v162 = vunpack.c.l.b16 %v42
  %v163 = vunpack.c.l.b16 %v43
  %v164 = vunpack.c.l.b16 %v44
  %v165 = vunpack.c.l.b16 %v45
  %v166 = vunpack.c.l.b16 %v46
  %v167 = vunpack.c.l.b16 %v47
  %v168 = vunpack.c.l.b16 %v48
  %v169 = vunpack.c.l.b16 %v49
  %v170 = vunpack.c.l.b16 %v50
  %v171 = vunpack.c.l.b16 %v51
  %v172 = vunpack.c.l.b16 %v52
  %v173 = vunpack.c.l.b16 %v53
  %v174 = vpack.c.b16 %v150, %v149
  %v175 = vpack.c.b16 %v152, %v151
  %v176 = vpack.c.b16 %v154, %v153
  %v177 = vpack.c.b16 %v156, %v155
  %v178 = vpack.c.b16 %v158, %v157
  %v179 = vpack.c.b16 %v160, %v159
  %v180 = vpack.c.b16 %v162, %v161
  %v181 = vpack.c.b16 %v164, %v163
  %v182 = vpack.c.b16 %v166, %v165
  %v183 = vpack.c.b16 %v168, %v167
  %v184 = vpack.c.b16 %v170, %v169
  %v185 = vpack.c.b16 %v172, %v171
  %v186 = vpack.c.b16 %v173, %v173
  %vm199 = vcmask 588800
  %v201 = vsel %vm199, %v104, 0
  %v204 = vsel %vm199, %v106, 0
  %v207 = vsel %vm199, %v108, 0
  %v210 = vsel %vm199, %v110, 0
  %v213 = vsel %vm199, %v112, 0
  %v216 = vsel %vm199, %v114, 0
  %v219 = vsel %vm199, %v116, 0
  %vm221 = vcmask 1043456
  %v223 = vsel %vm221, %v186, 0
  %225 = vmatprep.subr.bf16.mxu0 0
  %226 = vmatpush1.bf16.msra.mxu0 %v174
  %227 = vmatprep.subr.bf16.mxu0 0
  %228 = vmatpush1.bf16.msra.mxu0 %v175
  %229 = vmatprep.subr.bf16.mxu0 0
  %230 = vmatpush1.bf16.msra.mxu0 %v176
  %231 = vmatprep.subr.bf16.mxu0 0
  %232 = vmatpush1.bf16.msra.mxu0 %v177
  %233 = vmatprep.subr.bf16.mxu0 0
  %234 = vmatpush1.bf16.msra.mxu0 %v178
  %235 = vmatprep.subr.bf16.mxu0 0
  %236 = vmatpush1.bf16.msra.mxu0 %v179
  %237 = vmatprep.subr.bf16.mxu0 0
  %238 = vmatpush1.bf16.msra.mxu0 %v180
  %239 = vmatprep.subr.bf16.mxu0 0
  %240 = vmatpush1.bf16.msra.mxu0 %v181
  %241 = vmatprep.subr.bf16.mxu0 0
  %242 = vmatpush1.bf16.msra.mxu0 %v182
  %243 = vmatprep.subr.bf16.mxu0 0
  %244 = vmatpush1.bf16.msra.mxu0 %v183
  %245 = vmatprep.subr.bf16.mxu0 0
  %246 = vmatpush1.bf16.msra.mxu0 %v184
  %247 = vmatprep.subr.bf16.mxu0 0
  %248 = vmatpush1.bf16.msra.mxu0 %v185
  %249 = vmatprep.subr.bf16.mxu0 0
  %250 = vmatpush1.bf16.msra.mxu0 %v223
  %251 = vmatprep.subr.bf16.mxu0 0
  %252 = vmatpush1.bf16.msra.mxu0 0
  %253 = vmatprep.subr.bf16.mxu0 0
  %254 = vmatpush1.bf16.msra.mxu0 0
  %255 = vmatprep.subr.bf16.mxu0 0
  %256 = vmatpush1.bf16.msra.mxu0 0
  %257 = vmatprep.mubr.bf16.mxu0 %v201
  %258 = vmatmul.mubr.bf16.gmra.mrb[0].mxu0 %v103
  %v259 = vpop.f32.mrb[0].mxu0
  %v260 = vadd.f32 %v59, %v259
  %v261 = vpop.f32.mrb[0].mxu0
  %v262 = vpop.f32.mrb[0].mxu0
  %v263 = vadd.f32 %v59, %v262
  %v264 = vpop.f32.mrb[0].mxu0
  %265 = vmatprep.mubr.bf16.mxu0 %v204
  %266 = vmatmul.mubr.bf16.gmra.mrb[0].mxu0 %v105
  %v267 = vpop.f32.mrb[0].mxu0
  %v268 = vadd.f32 %v59, %v267
  %v269 = vpop.f32.mrb[0].mxu0
  %v270 = vpop.f32.mrb[0].mxu0
  %v271 = vadd.f32 %v59, %v270
  %v272 = vpop.f32.mrb[0].mxu0
  %273 = vmatprep.mubr.bf16.mxu0 %v207
  %274 = vmatmul.mubr.bf16.gmra.mrb[0].mxu0 %v107
  %v275 = vpop.f32.mrb[0].mxu0
  %v276 = vadd.f32 %v59, %v275
  %v277 = vpop.f32.mrb[0].mxu0
  %v278 = vpop.f32.mrb[0].mxu0
  %v279 = vadd.f32 %v59, %v278
  %v280 = vpop.f32.mrb[0].mxu0
  %281 = vmatprep.mubr.bf16.mxu0 %v210
  %282 = vmatmul.mubr.bf16.gmra.mrb[0].mxu0 %v109
  %v283 = vpop.f32.mrb[0].mxu0
  %v284 = vadd.f32 %v59, %v283
  %v285 = vpop.f32.mrb[0].mxu0
  %v286 = vpop.f32.mrb[0].mxu0
  %v287 = vadd.f32 %v59, %v286
  %v288 = vpop.f32.mrb[0].mxu0
  %289 = vmatprep.mubr.bf16.mxu0 %v213
  %290 = vmatmul.mubr.bf16.gmra.mrb[0].mxu0 %v111
  %v291 = vpop.f32.mrb[0].mxu0
  %v292 = vadd.f32 %v59, %v291
  %v293 = vpop.f32.mrb[0].mxu0
  %v294 = vpop.f32.mrb[0].mxu0
  %v295 = vadd.f32 %v59, %v294
  %v296 = vpop.f32.mrb[0].mxu0
  %297 = vmatprep.mubr.bf16.mxu0 %v216
  %298 = vmatmul.mubr.bf16.gmra.mrb[0].mxu0 %v113
  %v299 = vpop.f32.mrb[0].mxu0
  %v300 = vadd.f32 %v59, %v299
  %v301 = vpop.f32.mrb[0].mxu0
  %v302 = vpop.f32.mrb[0].mxu0
  %v303 = vadd.f32 %v59, %v302
  %v304 = vpop.f32.mrb[0].mxu0
  %305 = vmatprep.mubr.bf16.mxu0 %v219
  %306 = vmatmul.mubr.bf16.gmra.mrb[0].mxu0 %v115
  %v307 = vpop.f32.mrb[0].mxu0
  %v308 = vadd.f32 %v59, %v307
  %v309 = vpop.f32.mrb[0].mxu0
  %v310 = vpop.f32.mrb[0].mxu0
  %v311 = vadd.f32 %v59, %v310
  %v312 = vpop.f32.mrb[0].mxu0
  %313 = vdwg.mxu0
  %v314 = vmax.f32 %v260, 0.0
  %v315 = vmax.f32 %v263, 0.0
  %v316 = vmax.f32 %v268, 0.0
  %v317 = vmax.f32 %v271, 0.0
  %v318 = vmax.f32 %v276, 0.0
  %v319 = vmax.f32 %v279, 0.0
  %v320 = vmax.f32 %v284, 0.0
  %v321 = vmax.f32 %v287, 0.0
  %v322 = vmax.f32 %v292, 0.0
  %v323 = vmax.f32 %v295, 0.0
  %v324 = vmax.f32 %v300, 0.0
  %v325 = vmax.f32 %v303, 0.0
  %v326 = vmax.f32 %v308, 0.0
  %v327 = vmax.f32 %v311, 0.0
  %vm328 = vcmask 130048
  %329 = vst.msk [vmem:[%s3] sm:$0xff] %vm328, %v314
  %330 = vst.msk [vmem:[%s3 + $0x8] sm:$0xff] %vm328, %v315
  %331 = vst.msk [vmem:[%s3 + $0x10] sm:$0xff] %vm328, %v316
  %332 = vst.msk [vmem:[%s3 + $0x18] sm:$0xff] %vm328, %v317
  %333 = vst.msk [vmem:[%s3 + $0x20] sm:$0xff] %vm328, %v318
  %334 = vst.msk [vmem:[%s3 + $0x28] sm:$0xff] %vm328, %v319
  %335 = vst.msk [vmem:[%s3 + $0x30] sm:$0xff] %vm328, %v320
  %336 = vst.msk [vmem:[%s3 + $0x38] sm:$0xff] %vm328, %v321
  %337 = vst.msk [vmem:[%s3 + $0x40] sm:$0xff] %vm328, %v322
  %338 = vst.msk [vmem:[%s3 + $0x48] sm:$0xff] %vm328, %v323
  %339 = vst.msk [vmem:[%s3 + $0x50] sm:$0xff] %vm328, %v324
  %340 = vst.msk [vmem:[%s3 + $0x58] sm:$0xff] %vm328, %v325
  %341 = vst.msk [vmem:[%s3 + $0x60] sm:$0xff] %vm328, %v326
  %342 = vst.msk [vmem:[%s3 + $0x68] sm:$0xff] %vm328, %v327
  // Predicated region
  $region14: #{discriminator_forward.5} parent=0 // pred_check
    _
  $region15: #{discriminator_forward.5} parent=0 // pred_check_branch
    %344 = sbr.rel (0) target = $region17
  $region16: #{discriminator_forward.5} parent=0 // pred_region
    _
  $region17: #{discriminator_forward.5} parent=0 // pred_fallthru
    _
  // Predicated region
  $region18: #{discriminator_forward.5} parent=0 // pred_check
    _
  $region19: #{discriminator_forward.5} parent=0 // pred_check_branch
    %346 = sbr.rel (0) target = $region21
  $region20: #{discriminator_forward.5} parent=0 // pred_region
    _
  $region21: #{discriminator_forward.5} parent=0 // pred_fallthru
    _

// kernel: discriminator_forward.6
$region0: #{discriminator_forward.6}
  #allocation0 [shape = 'u32[]', space=smem, size = 0x4, offset = 0x4, fixed_abs, tag = 'smem constant byte address 0x4 - core index']
  #allocation1 [shape = 'u32[144,128]{1,0:T(1,128)}', space=vmem, size = 0x12000, scoped, tag = 'internal scratch']
  %s0 = inlined_call_operand.vmem [shape: bf16[32,400], index: 0, kind: input, shape index: {}]
  %s1 = inlined_call_operand.vmem [shape: bf16[400,32], index: 1, kind: input, shape index: {}]
  %s2 = inlined_call_operand.vmem [shape: f32[1,32], index: 2, kind: input, shape index: {}]
  %s3 = inlined_call_operand.vmem [shape: f32[32,32], index: 3, kind: output, shape index: {}]
  %s4 = sld [smem:[#allocation0]]
  $region22: #{discriminator_forward.6} parent=0
    _
  %s6 = ssub.s32 1, %s4
  %s7 = scalar_select 0, %s6, %s4
  // Predicated region
  $region2: #{discriminator_forward.6} parent=0 // pred_check
    _
  $region3: #{discriminator_forward.6} parent=0 // pred_check_branch
    %9 = sbr.rel (0) target = $region5
  $region4: #{discriminator_forward.6} parent=0 // pred_region
    _
  $region5: #{discriminator_forward.6} parent=0 // pred_fallthru
    _
  // Predicated region
  $region6: #{discriminator_forward.6} parent=0 // pred_check
    _
  $region7: #{discriminator_forward.6} parent=0 // pred_check_branch
    %11 = sbr.rel (0) target = $region9
  $region8: #{discriminator_forward.6} parent=0 // pred_region
    _
  $region9: #{discriminator_forward.6} parent=0 // pred_fallthru
    _
  // Predicated region
  $region10: #{discriminator_forward.6} parent=0 // pred_check
    _
  $region11: #{discriminator_forward.6} parent=0 // pred_check_branch
    %13 = sbr.rel (0) target = $region13
  $region12: #{discriminator_forward.6} parent=0 // pred_region
    _
  $region13: #{discriminator_forward.6} parent=0 // pred_fallthru
    _
  %v15 = vld [vmem:[%s0] sm:$0xff]
  %v16 = vld [vmem:[%s0 + $0x8] sm:$0xff]
  %v17 = vld [vmem:[%s0 + $0x10] sm:$0xff]
  %v18 = vld [vmem:[%s0 + $0x18] sm:$0xff]
  %v19 = vld [vmem:[%s0 + $0x20] sm:$0xff]
  %v20 = vld [vmem:[%s0 + $0x28] sm:$0xff]
  %v21 = vld [vmem:[%s0 + $0x30] sm:$0xff]
  %v22 = vld [vmem:[%s0 + $0x38] sm:$0xff]
  %v23 = vld [vmem:[%s1] sm:$0xf]
  %v24 = vld [vmem:[%s1 + $0x4] sm:$0xf]
  %v25 = vld [vmem:[%s1 + $0x8] sm:$0xf]
  %v26 = vld [vmem:[%s1 + $0xc] sm:$0xf]
  %v27 = vld [vmem:[%s1 + $0x10] sm:$0xf]
  %v28 = vld [vmem:[%s1 + $0x14] sm:$0xf]
  %v29 = vld [vmem:[%s1 + $0x18] sm:$0xf]
  %v30 = vld [vmem:[%s1 + $0x1c] sm:$0xf]
  %v31 = vld [vmem:[%s1 + $0x20] sm:$0xf]
  %v32 = vld [vmem:[%s1 + $0x24] sm:$0xf]
  %v33 = vld [vmem:[%s1 + $0x28] sm:$0xf]
  %v34 = vld [vmem:[%s1 + $0x2c] sm:$0xf]
  %v35 = vld [vmem:[%s1 + $0x30] sm:$0xf]
  %v36 = vld [vmem:[%s1 + $0x34] sm:$0xf]
  %v37 = vld [vmem:[%s1 + $0x38] sm:$0xf]
  %v38 = vld [vmem:[%s1 + $0x3c] sm:$0xf]
  %v39 = vld [vmem:[%s1 + $0x40] sm:$0xf]
  %v40 = vld [vmem:[%s1 + $0x44] sm:$0xf]
  %v41 = vld [vmem:[%s1 + $0x48] sm:$0xf]
  %v42 = vld [vmem:[%s1 + $0x4c] sm:$0xf]
  %v43 = vld [vmem:[%s1 + $0x50] sm:$0xf]
  %v44 = vld [vmem:[%s1 + $0x54] sm:$0xf]
  %v45 = vld [vmem:[%s1 + $0x58] sm:$0xf]
  %v46 = vld [vmem:[%s1 + $0x5c] sm:$0xf]
  %v47 = vld [vmem:[%s1 + $0x60] sm:$0xf]
  %v48 = vld [vmem:[%s1 + $0x64] sm:$0xf]
  %v49 = vld [vmem:[%s1 + $0x68] sm:$0xf]
  %v50 = vld [vmem:[%s1 + $0x6c] sm:$0xf]
  %v51 = vld [vmem:[%s1 + $0x70] sm:$0xf]
  %v52 = vld [vmem:[%s1 + $0x74] sm:$0xf]
  %v53 = vld [vmem:[%s1 + $0x78] sm:$0xf]
  %v54 = vld [vmem:[%s1 + $0x7c] sm:$0xf]
  %v55 = vld [vmem:[%s1 + $0x80] sm:$0xf]
  %v56 = vld [vmem:[%s1 + $0x84] sm:$0xf]
  %v57 = vld [vmem:[%s1 + $0x88] sm:$0xf]
  %v58 = vld [vmem:[%s1 + $0x8c] sm:$0xf]
  %v59 = vld [vmem:[%s1 + $0x90] sm:$0xf]
  %v60 = vld [vmem:[%s1 + $0x94] sm:$0xf]
  %v61 = vld [vmem:[%s1 + $0x98] sm:$0xf]
  %v62 = vld [vmem:[%s1 + $0x9c] sm:$0xf]
  %v63 = vld [vmem:[%s1 + $0xa0] sm:$0xf]
  %v64 = vld [vmem:[%s1 + $0xa4] sm:$0xf]
  %v65 = vld [vmem:[%s1 + $0xa8] sm:$0xf]
  %v66 = vld [vmem:[%s1 + $0xac] sm:$0xf]
  %v67 = vld [vmem:[%s1 + $0xb0] sm:$0xf]
  %v68 = vld [vmem:[%s1 + $0xb4] sm:$0xf]
  %v69 = vld [vmem:[%s1 + $0xb8] sm:$0xf]
  %v70 = vld [vmem:[%s1 + $0xbc] sm:$0xf]
  %v71 = vld [vmem:[%s1 + $0xc0] sm:$0xf]
  %v72 = vld [vmem:[%s1 + $0xc4] sm:$0xf]
  %v73 = vld [vmem:[%s2] sm:$0x1]
  %v75 = vlaneseq
  %v76 = vshrl.u32 %v75, 7
  %v77 = vsub.s32 0, %v76
  %v78 = vrot.slane %v73, %v77
  %v88 = vunpack.c.l.b16 %v15
  %v89 = vunpack.c.h.b16 %v15
  %v90 = vunpack.c.l.b16 %v16
  %v91 = vunpack.c.h.b16 %v16
  %v92 = vunpack.c.l.b16 %v17
  %v93 = vunpack.c.h.b16 %v17
  %v94 = vunpack.c.l.b16 %v18
  %v95 = vunpack.c.h.b16 %v18
  %v96 = vunpack.c.l.b16 %v19
  %v97 = vunpack.c.h.b16 %v19
  %v98 = vunpack.c.l.b16 %v20
  %v99 = vunpack.c.h.b16 %v20
  %v100 = vunpack.c.l.b16 %v21
  %v101 = vunpack.c.h.b16 %v21
  %v102 = vunpack.c.l.b16 %v22
  %v103 = vunpack.c.h.b16 %v22
  %v104 = vpack.c.b16 %v92, %v88
  %v105 = vpack.c.b16 %v93, %v89
  %v106 = vpack.c.b16 %v94, %v90
  %v107 = vpack.c.b16 %v95, %v91
  %v108 = vpack.c.b16 %v100, %v96
  %v109 = vpack.c.b16 %v101, %v97
  %v110 = vpack.c.b16 %v102, %v98
  %v111 = vpack.c.b16 %v103, %v99
  %v168 = vunpack.c.l.b16 %v23
  %v169 = vunpack.c.l.b16 %v24
  %v170 = vunpack.c.l.b16 %v25
  %v171 = vunpack.c.l.b16 %v26
  %v172 = vunpack.c.l.b16 %v27
  %v173 = vunpack.c.l.b16 %v28
  %v174 = vunpack.c.l.b16 %v29
  %v175 = vunpack.c.l.b16 %v30
  %v176 = vunpack.c.l.b16 %v31
  %v177 = vunpack.c.l.b16 %v32
  %v178 = vunpack.c.l.b16 %v33
  %v179 = vunpack.c.l.b16 %v34
  %v180 = vunpack.c.l.b16 %v35
  %v181 = vunpack.c.l.b16 %v36
  %v182 = vunpack.c.l.b16 %v37
  %v183 = vunpack.c.l.b16 %v38
  %v184 = vunpack.c.l.b16 %v39
  %v185 = vunpack.c.l.b16 %v40
  %v186 = vunpack.c.l.b16 %v41
  %v187 = vunpack.c.l.b16 %v42
  %v188 = vunpack.c.l.b16 %v43
  %v189 = vunpack.c.l.b16 %v44
  %v190 = vunpack.c.l.b16 %v45
  %v191 = vunpack.c.l.b16 %v46
  %v192 = vunpack.c.l.b16 %v47
  %v193 = vunpack.c.l.b16 %v48
  %v194 = vunpack.c.l.b16 %v49
  %v195 = vunpack.c.l.b16 %v50
  %v196 = vunpack.c.l.b16 %v51
  %v197 = vunpack.c.l.b16 %v52
  %v198 = vunpack.c.l.b16 %v53
  %v199 = vunpack.c.l.b16 %v54
  %v200 = vunpack.c.l.b16 %v55
  %v201 = vunpack.c.l.b16 %v56
  %v202 = vunpack.c.l.b16 %v57
  %v203 = vunpack.c.l.b16 %v58
  %v204 = vunpack.c.l.b16 %v59
  %v205 = vunpack.c.l.b16 %v60
  %v206 = vunpack.c.l.b16 %v61
  %v207 = vunpack.c.l.b16 %v62
  %v208 = vunpack.c.l.b16 %v63
  %v209 = vunpack.c.l.b16 %v64
  %v210 = vunpack.c.l.b16 %v65
  %v211 = vunpack.c.l.b16 %v66
  %v212 = vunpack.c.l.b16 %v67
  %v213 = vunpack.c.l.b16 %v68
  %v214 = vunpack.c.l.b16 %v69
  %v215 = vunpack.c.l.b16 %v70
  %v216 = vunpack.c.l.b16 %v71
  %v217 = vunpack.c.l.b16 %v72
  %v218 = vpack.c.b16 %v169, %v168
  %v219 = vpack.c.b16 %v171, %v170
  %v220 = vpack.c.b16 %v173, %v172
  %v221 = vpack.c.b16 %v175, %v174
  %v222 = vpack.c.b16 %v177, %v176
  %v223 = vpack.c.b16 %v179, %v178
  %v224 = vpack.c.b16 %v181, %v180
  %v225 = vpack.c.b16 %v183, %v182
  %v226 = vpack.c.b16 %v185, %v184
  %v227 = vpack.c.b16 %v187, %v186
  %v228 = vpack.c.b16 %v189, %v188
  %v229 = vpack.c.b16 %v191, %v190
  %v230 = vpack.c.b16 %v193, %v192
  %v231 = vpack.c.b16 %v195, %v194
  %v232 = vpack.c.b16 %v197, %v196
  %v233 = vpack.c.b16 %v199, %v198
  %v234 = vpack.c.b16 %v201, %v200
  %v235 = vpack.c.b16 %v203, %v202
  %v236 = vpack.c.b16 %v205, %v204
  %v237 = vpack.c.b16 %v207, %v206
  %v238 = vpack.c.b16 %v209, %v208
  %v239 = vpack.c.b16 %v211, %v210
  %v240 = vpack.c.b16 %v213, %v212
  %v241 = vpack.c.b16 %v215, %v214
  %v242 = vpack.c.b16 %v217, %v216
  %vm268 = vcmask 130048
  %v270 = vsel %vm268, %v107, 0
  %v273 = vsel %vm268, %v111, 0
  %275 = vmatprep.subr.bf16.mxu0 0
  %276 = vmatpush1.bf16.msra.mxu0 %v218
  %277 = vmatprep.subr.bf16.mxu0 0
  %278 = vmatpush1.bf16.msra.mxu0 %v219
  %279 = vmatprep.subr.bf16.mxu0 0
  %280 = vmatpush1.bf16.msra.mxu0 %v220
  %281 = vmatprep.subr.bf16.mxu0 0
  %282 = vmatpush1.bf16.msra.mxu0 %v221
  %283 = vmatprep.subr.bf16.mxu0 0
  %284 = vmatpush1.bf16.msra.mxu0 %v222
  %285 = vmatprep.subr.bf16.mxu0 0
  %286 = vmatpush1.bf16.msra.mxu0 %v223
  %287 = vmatprep.subr.bf16.mxu0 0
  %288 = vmatpush1.bf16.msra.mxu0 %v224
  %289 = vmatprep.subr.bf16.mxu0 0
  %290 = vmatpush1.bf16.msra.mxu0 %v225
  %291 = vmatprep.subr.bf16.mxu0 0
  %292 = vmatpush1.bf16.msra.mxu0 %v226
  %293 = vmatprep.subr.bf16.mxu0 0
  %294 = vmatpush1.bf16.msra.mxu0 %v227
  %295 = vmatprep.subr.bf16.mxu0 0
  %296 = vmatpush1.bf16.msra.mxu0 %v228
  %297 = vmatprep.subr.bf16.mxu0 0
  %298 = vmatpush1.bf16.msra.mxu0 %v229
  %299 = vmatprep.subr.bf16.mxu0 0
  %300 = vmatpush1.bf16.msra.mxu0 %v230
  %301 = vmatprep.subr.bf16.mxu0 0
  %302 = vmatpush1.bf16.msra.mxu0 %v231
  %303 = vmatprep.subr.bf16.mxu0 0
  %304 = vmatpush1.bf16.msra.mxu0 %v232
  %305 = vmatprep.subr.bf16.mxu0 0
  %306 = vmatpush1.bf16.msra.mxu0 %v233
  %307 = vmatprep.mubr.bf16.mxu0 %v105
  %308 = vmatmul.mubr.bf16.gmra.mrb[0].mxu0 %v104
  %v309 = vpop.f32.mrb[0].mxu0
  %v310 = vadd.f32 %v78, %v309
  %v311 = vpop.f32.mrb[0].mxu0
  %v312 = vpop.f32.mrb[0].mxu0
  %v313 = vadd.f32 %v78, %v312
  %v314 = vpop.f32.mrb[0].mxu0
  %315 = vmatprep.mubr.bf16.mxu0 %v109
  %316 = vmatmul.mubr.bf16.gmra.mrb[0].mxu0 %v108
  %v317 = vpop.f32.mrb[0].mxu0
  %v318 = vadd.f32 %v78, %v317
  %v319 = vpop.f32.mrb[0].mxu0
  %v320 = vpop.f32.mrb[0].mxu0
  %v321 = vadd.f32 %v78, %v320
  %v322 = vpop.f32.mrb[0].mxu0
  %323 = vdwg.mxu0
  %324 = vmatprep.subr.bf16.mxu0 0
  %325 = vmatpush1.bf16.msra.mxu0 %v234
  %326 = vmatprep.subr.bf16.mxu0 0
  %327 = vmatpush1.bf16.msra.mxu0 %v235
  %328 = vmatprep.subr.bf16.mxu0 0
  %329 = vmatpush1.bf16.msra.mxu0 %v236
  %330 = vmatprep.subr.bf16.mxu0 0
  %331 = vmatpush1.bf16.msra.mxu0 %v237
  %332 = vmatprep.subr.bf16.mxu0 0
  %333 = vmatpush1.bf16.msra.mxu0 %v238
  %334 = vmatprep.subr.bf16.mxu0 0
  %335 = vmatpush1.bf16.msra.mxu0 %v239
  %336 = vmatprep.subr.bf16.mxu0 0
  %337 = vmatpush1.bf16.msra.mxu0 %v240
  %338 = vmatprep.subr.bf16.mxu0 0
  %339 = vmatpush1.bf16.msra.mxu0 %v241
  %340 = vmatprep.subr.bf16.mxu0 0
  %341 = vmatpush1.bf16.msra.mxu0 %v242
  %342 = vmatprep.subr.bf16.mxu0 0
  %343 = vmatpush1.bf16.msra.mxu0 0
  %344 = vmatprep.subr.bf16.mxu0 0
  %345 = vmatpush1.bf16.msra.mxu0 0
  %346 = vmatprep.subr.bf16.mxu0 0
  %347 = vmatpush1.bf16.msra.mxu0 0
  %348 = vmatprep.subr.bf16.mxu0 0
  %349 = vmatpush1.bf16.msra.mxu0 0
  %350 = vmatprep.subr.bf16.mxu0 0
  %351 = vmatpush1.bf16.msra.mxu0 0
  %352 = vmatprep.subr.bf16.mxu0 0
  %353 = vmatpush1.bf16.msra.mxu0 0
  %354 = vmatprep.subr.bf16.mxu0 0
  %355 = vmatpush1.bf16.msra.mxu0 0
  %356 = vmatprep.mubr.bf16.mxu0 %v270
  %357 = vmatmul.mubr.bf16.gmra.mrb[0].mxu0 %v106
  %v358 = vpop.f32.mrb[0].mxu0
  %v359 = vadd.f32 %v310, %v358
  %v360 = vpop.f32.mrb[0].mxu0
  %v361 = vpop.f32.mrb[0].mxu0
  %v362 = vadd.f32 %v313, %v361
  %v363 = vpop.f32.mrb[0].mxu0
  %364 = vmatprep.mubr.bf16.mxu0 %v273
  %365 = vmatmul.mubr.bf16.gmra.mrb[0].mxu0 %v110
  %v366 = vpop.f32.mrb[0].mxu0
  %v367 = vadd.f32 %v318, %v366
  %v368 = vpop.f32.mrb[0].mxu0
  %v369 = vpop.f32.mrb[0].mxu0
  %v370 = vadd.f32 %v321, %v369
  %v371 = vpop.f32.mrb[0].mxu0
  %372 = vdwg.mxu0
  %v373 = vmax.f32 %v359, 0.0
  %v374 = vmax.f32 %v362, 0.0
  %v375 = vmax.f32 %v367, 0.0
  %v376 = vmax.f32 %v370, 0.0
  %vm377 = vcmask 261120
  %378 = vst.msk [vmem:[%s3] sm:$0xff] %vm377, %v373
  %379 = vst.msk [vmem:[%s3 + $0x8] sm:$0xff] %vm377, %v374
  %380 = vst.msk [vmem:[%s3 + $0x10] sm:$0xff] %vm377, %v375
  %381 = vst.msk [vmem:[%s3 + $0x18] sm:$0xff] %vm377, %v376
  // Predicated region
  $region14: #{discriminator_forward.6} parent=0 // pred_check
    _
  $region15: #{discriminator_forward.6} parent=0 // pred_check_branch
    %383 = sbr.rel (0) target = $region17
  $region16: #{discriminator_forward.6} parent=0 // pred_region
    _
  $region17: #{discriminator_forward.6} parent=0 // pred_fallthru
    _
  // Predicated region
  $region18: #{discriminator_forward.6} parent=0 // pred_check
    _
  $region19: #{discriminator_forward.6} parent=0 // pred_check_branch
    %385 = sbr.rel (0) target = $region21
  $region20: #{discriminator_forward.6} parent=0 // pred_region
    _
  $region21: #{discriminator_forward.6} parent=0 // pred_fallthru
    _

// kernel: discriminator_forward.7
$region0: #{discriminator_forward.7}
  #allocation0 [shape = 'u32[]', space=smem, size = 0x4, offset = 0x4, fixed_abs, tag = 'smem constant byte address 0x4 - core index']
  #allocation1 [shape = 'u32[144,128]{1,0:T(1,128)}', space=vmem, size = 0x12000, scoped, tag = 'internal scratch']
  %s0 = inlined_call_operand.vmem [shape: bf16[16,512], index: 0, kind: input, shape index: {}]
  %s1 = inlined_call_operand.vmem [shape: bf16[512,8], index: 1, kind: input, shape index: {}]
  %s2 = inlined_call_operand.vmem [shape: f32[1,8], index: 2, kind: input, shape index: {}]
  %s3 = inlined_call_operand.vmem [shape: f32[16,8], index: 3, kind: output, shape index: {}]
  %s4 = sld [smem:[#allocation0]]
  $region22: #{discriminator_forward.7} parent=0
    _
  %s6 = ssub.s32 1, %s4
  %s7 = scalar_select 0, %s6, %s4
  // Predicated region
  $region2: #{discriminator_forward.7} parent=0 // pred_check
    _
  $region3: #{discriminator_forward.7} parent=0 // pred_check_branch
    %9 = sbr.rel (0) target = $region5
  $region4: #{discriminator_forward.7} parent=0 // pred_region
    _
  $region5: #{discriminator_forward.7} parent=0 // pred_fallthru
    _
  // Predicated region
  $region6: #{discriminator_forward.7} parent=0 // pred_check
    _
  $region7: #{discriminator_forward.7} parent=0 // pred_check_branch
    %11 = sbr.rel (0) target = $region9
  $region8: #{discriminator_forward.7} parent=0 // pred_region
    _
  $region9: #{discriminator_forward.7} parent=0 // pred_fallthru
    _
  // Predicated region
  $region10: #{discriminator_forward.7} parent=0 // pred_check
    _
  $region11: #{discriminator_forward.7} parent=0 // pred_check_branch
    %13 = sbr.rel (0) target = $region13
  $region12: #{discriminator_forward.7} parent=0 // pred_region
    _
  $region13: #{discriminator_forward.7} parent=0 // pred_fallthru
    _
  %v15 = vld [vmem:[%s0] sm:$0xff]
  %v16 = vld [vmem:[%s0 + $0x8] sm:$0xff]
  %v17 = vld [vmem:[%s0 + $0x10] sm:$0xff]
  %v18 = vld [vmem:[%s0 + $0x18] sm:$0xff]
  %v19 = vld [vmem:[%s1] sm:$0xf]
  %v20 = vld [vmem:[%s1 + $0x4] sm:$0xf]
  %v21 = vld [vmem:[%s1 + $0x8] sm:$0xf]
  %v22 = vld [vmem:[%s1 + $0xc] sm:$0xf]
  %v23 = vld [vmem:[%s1 + $0x10] sm:$0xf]
  %v24 = vld [vmem:[%s1 + $0x14] sm:$0xf]
  %v25 = vld [vmem:[%s1 + $0x18] sm:$0xf]
  %v26 = vld [vmem:[%s1 + $0x1c] sm:$0xf]
  %v27 = vld [vmem:[%s1 + $0x20] sm:$0xf]
  %v28 = vld [vmem:[%s1 + $0x24] sm:$0xf]
  %v29 = vld [vmem:[%s1 + $0x28] sm:$0xf]
  %v30 = vld [vmem:[%s1 + $0x2c] sm:$0xf]
  %v31 = vld [vmem:[%s1 + $0x30] sm:$0xf]
  %v32 = vld [vmem:[%s1 + $0x34] sm:$0xf]
  %v33 = vld [vmem:[%s1 + $0x38] sm:$0xf]
  %v34 = vld [vmem:[%s1 + $0x3c] sm:$0xf]
  %v35 = vld [vmem:[%s1 + $0x40] sm:$0xf]
  %v36 = vld [vmem:[%s1 + $0x44] sm:$0xf]
  %v37 = vld [vmem:[%s1 + $0x48] sm:$0xf]
  %v38 = vld [vmem:[%s1 + $0x4c] sm:$0xf]
  %v39 = vld [vmem:[%s1 + $0x50] sm:$0xf]
  %v40 = vld [vmem:[%s1 + $0x54] sm:$0xf]
  %v41 = vld [vmem:[%s1 + $0x58] sm:$0xf]
  %v42 = vld [vmem:[%s1 + $0x5c] sm:$0xf]
  %v43 = vld [vmem:[%s1 + $0x60] sm:$0xf]
  %v44 = vld [vmem:[%s1 + $0x64] sm:$0xf]
  %v45 = vld [vmem:[%s1 + $0x68] sm:$0xf]
  %v46 = vld [vmem:[%s1 + $0x6c] sm:$0xf]
  %v47 = vld [vmem:[%s1 + $0x70] sm:$0xf]
  %v48 = vld [vmem:[%s1 + $0x74] sm:$0xf]
  %v49 = vld [vmem:[%s1 + $0x78] sm:$0xf]
  %v50 = vld [vmem:[%s1 + $0x7c] sm:$0xf]
  %v51 = vld [vmem:[%s1 + $0x80] sm:$0xf]
  %v52 = vld [vmem:[%s1 + $0x84] sm:$0xf]
  %v53 = vld [vmem:[%s1 + $0x88] sm:$0xf]
  %v54 = vld [vmem:[%s1 + $0x8c] sm:$0xf]
  %v55 = vld [vmem:[%s1 + $0x90] sm:$0xf]
  %v56 = vld [vmem:[%s1 + $0x94] sm:$0xf]
  %v57 = vld [vmem:[%s1 + $0x98] sm:$0xf]
  %v58 = vld [vmem:[%s1 + $0x9c] sm:$0xf]
  %v59 = vld [vmem:[%s1 + $0xa0] sm:$0xf]
  %v60 = vld [vmem:[%s1 + $0xa4] sm:$0xf]
  %v61 = vld [vmem:[%s1 + $0xa8] sm:$0xf]
  %v62 = vld [vmem:[%s1 + $0xac] sm:$0xf]
  %v63 = vld [vmem:[%s1 + $0xb0] sm:$0xf]
  %v64 = vld [vmem:[%s1 + $0xb4] sm:$0xf]
  %v65 = vld [vmem:[%s1 + $0xb8] sm:$0xf]
  %v66 = vld [vmem:[%s1 + $0xbc] sm:$0xf]
  %v67 = vld [vmem:[%s1 + $0xc0] sm:$0xf]
  %v68 = vld [vmem:[%s1 + $0xc4] sm:$0xf]
  %v69 = vld [vmem:[%s1 + $0xc8] sm:$0xf]
  %v70 = vld [vmem:[%s1 + $0xcc] sm:$0xf]
  %v71 = vld [vmem:[%s1 + $0xd0] sm:$0xf]
  %v72 = vld [vmem:[%s1 + $0xd4] sm:$0xf]
  %v73 = vld [vmem:[%s1 + $0xd8] sm:$0xf]
  %v74 = vld [vmem:[%s1 + $0xdc] sm:$0xf]
  %v75 = vld [vmem:[%s1 + $0xe0] sm:$0xf]
  %v76 = vld [vmem:[%s1 + $0xe4] sm:$0xf]
  %v77 = vld [vmem:[%s1 + $0xe8] sm:$0xf]
  %v78 = vld [vmem:[%s1 + $0xec] sm:$0xf]
  %v79 = vld [vmem:[%s1 + $0xf0] sm:$0xf]
  %v80 = vld [vmem:[%s1 + $0xf4] sm:$0xf]
  %v81 = vld [vmem:[%s1 + $0xf8] sm:$0xf]
  %v82 = vld [vmem:[%s1 + $0xfc] sm:$0xf]
  %v83 = vld [vmem:[%s2] sm:$0x1]
  %v85 = vlaneseq
  %v86 = vshrl.u32 %v85, 7
  %v87 = vsub.s32 0, %v86
  %v88 = vrot.slane %v83, %v87
  %v94 = vunpack.c.l.b16 %v15
  %v95 = vunpack.c.h.b16 %v15
  %v96 = vunpack.c.l.b16 %v16
  %v97 = vunpack.c.h.b16 %v16
  %v98 = vunpack.c.l.b16 %v17
  %v99 = vunpack.c.h.b16 %v17
  %v100 = vunpack.c.l.b16 %v18
  %v101 = vunpack.c.h.b16 %v18
  %v102 = vpack.c.b16 %v98, %v94
  %v103 = vpack.c.b16 %v99, %v95
  %v104 = vpack.c.b16 %v100, %v96
  %v105 = vpack.c.b16 %v101, %v97
  %v174 = vunpack.c.l.b16 %v19
  %v175 = vunpack.c.l.b16 %v20
  %v176 = vunpack.c.l.b16 %v21
  %v177 = vunpack.c.l.b16 %v22
  %v178 = vunpack.c.l.b16 %v23
  %v179 = vunpack.c.l.b16 %v24
  %v180 = vunpack.c.l.b16 %v25
  %v181 = vunpack.c.l.b16 %v26
  %v182 = vunpack.c.l.b16 %v27
  %v183 = vunpack.c.l.b16 %v28
  %v184 = vunpack.c.l.b16 %v29
  %v185 = vunpack.c.l.b16 %v30
  %v186 = vunpack.c.l.b16 %v31
  %v187 = vunpack.c.l.b16 %v32
  %v188 = vunpack.c.l.b16 %v33
  %v189 = vunpack.c.l.b16 %v34
  %v190 = vunpack.c.l.b16 %v35
  %v191 = vunpack.c.l.b16 %v36
  %v192 = vunpack.c.l.b16 %v37
  %v193 = vunpack.c.l.b16 %v38
  %v194 = vunpack.c.l.b16 %v39
  %v195 = vunpack.c.l.b16 %v40
  %v196 = vunpack.c.l.b16 %v41
  %v197 = vunpack.c.l.b16 %v42
  %v198 = vunpack.c.l.b16 %v43
  %v199 = vunpack.c.l.b16 %v44
  %v200 = vunpack.c.l.b16 %v45
  %v201 = vunpack.c.l.b16 %v46
  %v202 = vunpack.c.l.b16 %v47
  %v203 = vunpack.c.l.b16 %v48
  %v204 = vunpack.c.l.b16 %v49
  %v205 = vunpack.c.l.b16 %v50
  %v206 = vunpack.c.l.b16 %v51
  %v207 = vunpack.c.l.b16 %v52
  %v208 = vunpack.c.l.b16 %v53
  %v209 = vunpack.c.l.b16 %v54
  %v210 = vunpack.c.l.b16 %v55
  %v211 = vunpack.c.l.b16 %v56
  %v212 = vunpack.c.l.b16 %v57
  %v213 = vunpack.c.l.b16 %v58
  %v214 = vunpack.c.l.b16 %v59
  %v215 = vunpack.c.l.b16 %v60
  %v216 = vunpack.c.l.b16 %v61
  %v217 = vunpack.c.l.b16 %v62
  %v218 = vunpack.c.l.b16 %v63
  %v219 = vunpack.c.l.b16 %v64
  %v220 = vunpack.c.l.b16 %v65
  %v221 = vunpack.c.l.b16 %v66
  %v222 = vunpack.c.l.b16 %v67
  %v223 = vunpack.c.l.b16 %v68
  %v224 = vunpack.c.l.b16 %v69
  %v225 = vunpack.c.l.b16 %v70
  %v226 = vunpack.c.l.b16 %v71
  %v227 = vunpack.c.l.b16 %v72
  %v228 = vunpack.c.l.b16 %v73
  %v229 = vunpack.c.l.b16 %v74
  %v230 = vunpack.c.l.b16 %v75
  %v231 = vunpack.c.l.b16 %v76
  %v232 = vunpack.c.l.b16 %v77
  %v233 = vunpack.c.l.b16 %v78
  %v234 = vunpack.c.l.b16 %v79
  %v235 = vunpack.c.l.b16 %v80
  %v236 = vunpack.c.l.b16 %v81
  %v237 = vunpack.c.l.b16 %v82
  %v238 = vpack.c.b16 %v175, %v174
  %v239 = vpack.c.b16 %v177, %v176
  %v240 = vpack.c.b16 %v179, %v178
  %v241 = vpack.c.b16 %v181, %v180
  %v242 = vpack.c.b16 %v183, %v182
  %v243 = vpack.c.b16 %v185, %v184
  %v244 = vpack.c.b16 %v187, %v186
  %v245 = vpack.c.b16 %v189, %v188
  %v246 = vpack.c.b16 %v191, %v190
  %v247 = vpack.c.b16 %v193, %v192
  %v248 = vpack.c.b16 %v195, %v194
  %v249 = vpack.c.b16 %v197, %v196
  %v250 = vpack.c.b16 %v199, %v198
  %v251 = vpack.c.b16 %v201, %v200
  %v252 = vpack.c.b16 %v203, %v202
  %v253 = vpack.c.b16 %v205, %v204
  %v254 = vpack.c.b16 %v207, %v206
  %v255 = vpack.c.b16 %v209, %v208
  %v256 = vpack.c.b16 %v211, %v210
  %v257 = vpack.c.b16 %v213, %v212
  %v258 = vpack.c.b16 %v215, %v214
  %v259 = vpack.c.b16 %v217, %v216
  %v260 = vpack.c.b16 %v219, %v218
  %v261 = vpack.c.b16 %v221, %v220
  %v262 = vpack.c.b16 %v223, %v222
  %v263 = vpack.c.b16 %v225, %v224
  %v264 = vpack.c.b16 %v227, %v226
  %v265 = vpack.c.b16 %v229, %v228
  %v266 = vpack.c.b16 %v231, %v230
  %v267 = vpack.c.b16 %v233, %v232
  %v268 = vpack.c.b16 %v235, %v234
  %v269 = vpack.c.b16 %v237, %v236
  %302 = vmatprep.subr.bf16.mxu0 0
  %303 = vmatpush1.bf16.msra.mxu0 %v238
  %304 = vmatprep.subr.bf16.mxu0 0
  %305 = vmatpush1.bf16.msra.mxu0 %v239
  %306 = vmatprep.subr.bf16.mxu0 0
  %307 = vmatpush1.bf16.msra.mxu0 %v240
  %308 = vmatprep.subr.bf16.mxu0 0
  %309 = vmatpush1.bf16.msra.mxu0 %v241
  %310 = vmatprep.subr.bf16.mxu0 0
  %311 = vmatpush1.bf16.msra.mxu0 %v242
  %312 = vmatprep.subr.bf16.mxu0 0
  %313 = vmatpush1.bf16.msra.mxu0 %v243
  %314 = vmatprep.subr.bf16.mxu0 0
  %315 = vmatpush1.bf16.msra.mxu0 %v244
  %316 = vmatprep.subr.bf16.mxu0 0
  %317 = vmatpush1.bf16.msra.mxu0 %v245
  %318 = vmatprep.subr.bf16.mxu0 0
  %319 = vmatpush1.bf16.msra.mxu0 %v246
  %320 = vmatprep.subr.bf16.mxu0 0
  %321 = vmatpush1.bf16.msra.mxu0 %v247
  %322 = vmatprep.subr.bf16.mxu0 0
  %323 = vmatpush1.bf16.msra.mxu0 %v248
  %324 = vmatprep.subr.bf16.mxu0 0
  %325 = vmatpush1.bf16.msra.mxu0 %v249
  %326 = vmatprep.subr.bf16.mxu0 0
  %327 = vmatpush1.bf16.msra.mxu0 %v250
  %328 = vmatprep.subr.bf16.mxu0 0
  %329 = vmatpush1.bf16.msra.mxu0 %v251
  %330 = vmatprep.subr.bf16.mxu0 0
  %331 = vmatpush1.bf16.msra.mxu0 %v252
  %332 = vmatprep.subr.bf16.mxu0 0
  %333 = vmatpush1.bf16.msra.mxu0 %v253
  %334 = vmatprep.mubr.bf16.mxu0 %v103
  %335 = vmatmul.mubr.bf16.gmra.mrb[0].mxu0 %v102
  %v336 = vpop.f32.mrb[0].mxu0
  %v337 = vadd.f32 %v88, %v336
  %v338 = vpop.f32.mrb[0].mxu0
  %v339 = vpop.f32.mrb[0].mxu0
  %v340 = vadd.f32 %v88, %v339
  %v341 = vpop.f32.mrb[0].mxu0
  %342 = vdwg.mxu0
  %343 = vmatprep.subr.bf16.mxu0 0
  %344 = vmatpush1.bf16.msra.mxu0 %v254
  %345 = vmatprep.subr.bf16.mxu0 0
  %346 = vmatpush1.bf16.msra.mxu0 %v255
  %347 = vmatprep.subr.bf16.mxu0 0
  %348 = vmatpush1.bf16.msra.mxu0 %v256
  %349 = vmatprep.subr.bf16.mxu0 0
  %350 = vmatpush1.bf16.msra.mxu0 %v257
  %351 = vmatprep.subr.bf16.mxu0 0
  %352 = vmatpush1.bf16.msra.mxu0 %v258
  %353 = vmatprep.subr.bf16.mxu0 0
  %354 = vmatpush1.bf16.msra.mxu0 %v259
  %355 = vmatprep.subr.bf16.mxu0 0
  %356 = vmatpush1.bf16.msra.mxu0 %v260
  %357 = vmatprep.subr.bf16.mxu0 0
  %358 = vmatpush1.bf16.msra.mxu0 %v261
  %359 = vmatprep.subr.bf16.mxu0 0
  %360 = vmatpush1.bf16.msra.mxu0 %v262
  %361 = vmatprep.subr.bf16.mxu0 0
  %362 = vmatpush1.bf16.msra.mxu0 %v263
  %363 = vmatprep.subr.bf16.mxu0 0
  %364 = vmatpush1.bf16.msra.mxu0 %v264
  %365 = vmatprep.subr.bf16.mxu0 0
  %366 = vmatpush1.bf16.msra.mxu0 %v265
  %367 = vmatprep.subr.bf16.mxu0 0
  %368 = vmatpush1.bf16.msra.mxu0 %v266
  %369 = vmatprep.subr.bf16.mxu0 0
  %370 = vmatpush1.bf16.msra.mxu0 %v267
  %371 = vmatprep.subr.bf16.mxu0 0
  %372 = vmatpush1.bf16.msra.mxu0 %v268
  %373 = vmatprep.subr.bf16.mxu0 0
  %374 = vmatpush1.bf16.msra.mxu0 %v269
  %375 = vmatprep.mubr.bf16.mxu0 %v105
  %376 = vmatmul.mubr.bf16.gmra.mrb[0].mxu0 %v104
  %v377 = vpop.f32.mrb[0].mxu0
  %v378 = vadd.f32 %v337, %v377
  %v379 = vpop.f32.mrb[0].mxu0
  %v380 = vpop.f32.mrb[0].mxu0
  %v381 = vadd.f32 %v340, %v380
  %v382 = vpop.f32.mrb[0].mxu0
  %383 = vdwg.mxu0
  %vm384 = vcmask 64512
  %385 = vst.msk [vmem:[%s3] sm:$0xff] %vm384, %v378
  %386 = vst.msk [vmem:[%s3 + $0x8] sm:$0xff] %vm384, %v381
  // Predicated region
  $region14: #{discriminator_forward.7} parent=0 // pred_check
    _
  $region15: #{discriminator_forward.7} parent=0 // pred_check_branch
    %388 = sbr.rel (0) target = $region17
  $region16: #{discriminator_forward.7} parent=0 // pred_region
    _
  $region17: #{discriminator_forward.7} parent=0 // pred_fallthru
    _
  // Predicated region
  $region18: #{discriminator_forward.7} parent=0 // pred_check
    _
  $region19: #{discriminator_forward.7} parent=0 // pred_check_branch
    %390 = sbr.rel (0) target = $region21
  $region20: #{discriminator_forward.7} parent=0 // pred_region
    _
  $region21: #{discriminator_forward.7} parent=0 // pred_fallthru
    _

</llo_original>
